<compile_context>
chip_gen: v5e
topology: v5e:2x2
jax: 0.10.0
libtpu: 0.0.40
codegen_flags: <defaults>
</compile_context>

<pallas_src>
import jax
import jax.numpy as jnp
from jax.experimental import pallas as pl
from jax.experimental.pallas import tpu as pltpu

H1 = 256
H2 = 1028        # as in the PyTorch module (yes, 1028, not 1024)
H2_PAD = 1152    # next multiple of 128
BN_EPS = 1e-5


def _round_up(x, m):
    return (x + m - 1) // m * m


# -----------------------------------------------------------------------------
# Kernel
# -----------------------------------------------------------------------------
def zeta_decoder_kernel(x_ref,
                        w1_ref, t1_ref,
                        w2_ref, t2_ref,
                        w3_ref, b3_ref,
                        o_ref,
                        h_ref):
    # Layers 1 & 2 are computed once per batch tile (j == 0) into VMEM scratch,
    # then reused for every dict_size (N) tile.
    @pl.when(pl.program_id(1) == 0)
    def _():
        h1 = jnp.dot(x_ref[...], w1_ref[...],
                     preferred_element_type=jnp.float32)
        h1 = jnp.maximum(h1 + t1_ref[...], 0.0).astype(jnp.bfloat16)
        h2 = jnp.dot(h1, w2_ref[...],
                     preferred_element_type=jnp.float32)
        h_ref[...] = jnp.maximum(h2 + t2_ref[...], 0.0).astype(h_ref.dtype)

    # Layer 3: stream one lane-dense N tile of w3 per grid step.
    out = jnp.dot(h_ref[...], w3_ref[...],
                  preferred_element_type=jnp.float32)
    o_ref[...] = (out + b3_ref[...]).astype(o_ref.dtype)


# -----------------------------------------------------------------------------
# Offline parameter folding / padding (done once, outside the kernel)
# -----------------------------------------------------------------------------
def prepare_params(raw, dict_size, *, block_n=512):
    """Fold biases + eval-mode BN into weights; pad to lane-dense shapes."""
    tn = min(block_n, _round_up(dict_size, 128))       # multiple of 128
    n_pad = _round_up(dict_size, tn)

    latent_dim = raw["w1"].shape[0]

    # Layer 1: y = (x@w1 + b1)*s1 + t1 = x@(w1*s1) + (b1*s1 + t1)
    w1f = (raw["w1"] * raw["s1"]).astype(jnp.bfloat16)
    t1f = (raw["b1"] * raw["s1"] + raw["t1"]).astype(jnp.float32)

    # Layer 2: fold, then zero-pad hidden width 1028 -> 1152.
    w2f = jnp.zeros((H1, H2_PAD), jnp.float32)
    w2f = w2f.at[:, :H2].set(raw["w2"] * raw["s2"]).astype(jnp.bfloat16)
    t2f = jnp.zeros((1, H2_PAD), jnp.float32)
    t2f = t2f.at[:, :H2].set(raw["b2"] * raw["s2"] + raw["t2"])

    # Layer 3: pad rows 1028->1152 (zeros) and columns dict_size -> n_pad.
    w3p = jnp.zeros((H2_PAD, n_pad), jnp.float32)
    w3p = w3p.at[:H2, :dict_size].set(raw["w3"]).astype(jnp.bfloat16)
    b3p = jnp.zeros((1, n_pad), jnp.float32)
    b3p = b3p.at[:, :dict_size].set(raw["b3"])

    return dict(w1f=w1f, t1f=t1f, w2f=w2f, t2f=t2f, w3p=w3p, b3p=b3p,
                tn=tn, n_pad=n_pad, dict_size=dict_size,
                latent_dim=latent_dim)


# -----------------------------------------------------------------------------
# Wrapper
# -----------------------------------------------------------------------------
def zeta_decoder(x, prep, *, block_b=None):
    """Fused ZetaDecoder forward.  x: (B, latent_dim) float32."""
    B, latent_dim = x.shape
    assert latent_dim == prep["latent_dim"]
    tn = prep["tn"]
    n_pad = prep["n_pad"]
    dict_size = prep["dict_size"]

    # Batch tile: multiple of 8, up to 256 (fills the MXU M dim and gives
    # multiple "parallel" grid steps for pipelining / megacore on v7x).
    if block_b is None:
        block_b = min(256, _round_up(B, 8))
    block_b = _round_up(block_b, 8)
    b_pad = _round_up(B, block_b)

    x_p = x.astype(jnp.bfloat16)
    if b_pad != B:
        x_p = jnp.pad(x_p, ((0, b_pad - B), (0, 0)))

    grid = (b_pad // block_b, n_pad // tn)

    def rep(shape):
        # Small, grid-invariant operands: stay VMEM-resident every step.
        return pl.BlockSpec(shape, lambda i, j: (0, 0))

    in_specs = [
        pl.BlockSpec((block_b, latent_dim), lambda i, j: (i, 0)),   # x
        rep((latent_dim, H1)),          # w1 (BN-scale folded, bf16)
        rep((1, H1)),                   # t1 (bias+shift folded, f32)
        rep((H1, H2_PAD)),              # w2 (folded, padded, bf16)
        rep((1, H2_PAD)),               # t2
        pl.BlockSpec((H2_PAD, tn), lambda i, j: (0, j)),            # w3 N tile
        pl.BlockSpec((1, tn), lambda i, j: (0, j)),                 # b3 N tile
    ]
    out_specs = pl.BlockSpec((block_b, tn), lambda i, j: (i, j))

    # VMEM budget (double-buffered inputs/outputs + scratch) with headroom;
    # explicit so tile choices stay honest under v7x's 64 MiB.
    bf16, f32 = 2, 4
    vmem_est = (
        2 * block_b * latent_dim * bf16
        + 2 * (latent_dim * H1 * bf16 + 8 * H1 * f32)
        + 2 * (H1 * H2_PAD * bf16 + 8 * H2_PAD * f32)
        + 2 * (H2_PAD * tn * bf16 + 8 * tn * f32)
        + 2 * block_b * tn * f32
        + block_b * H2_PAD * bf16
    )
    vmem_limit = int(min(48 * 1024 * 1024,
                         max(16 * 1024 * 1024, 2 * vmem_est)))

    flops = 2 * b_pad * (latent_dim * H1 + H1 * H2_PAD + H2_PAD * n_pad)
    bytes_accessed = (
        b_pad * latent_dim * bf16
        + (latent_dim * H1 + H1 * H2_PAD + H2_PAD * n_pad) * bf16
        + (H1 + H2_PAD + n_pad) * f32
        + b_pad * n_pad * f32
    )
    cost = pl.CostEstimate(flops=int(flops), transcendentals=0,
                           bytes_accessed=int(bytes_accessed))

    fn = pl.pallas_call(
        zeta_decoder_kernel,
        out_shape=jax.ShapeDtypeStruct((b_pad, n_pad), jnp.float32),
        grid_spec=pltpu.PrefetchScalarGridSpec(
            num_scalar_prefetch=0,
            grid=grid,
            in_specs=in_specs,
            out_specs=out_specs,
            scratch_shapes=[pltpu.VMEM((block_b, H2_PAD), jnp.bfloat16)],
        ),
        compiler_params=pltpu.CompilerParams(
            dimension_semantics=("parallel", "arbitrary"),
            vmem_limit_bytes=vmem_limit,
        ),
        cost_estimate=cost,
    )
    out = fn(x_p,
             prep["w1f"], prep["t1f"],
             prep["w2f"], prep["t2f"],
             prep["w3p"], prep["b3p"])
    return out[:B, :dict_size]


# -----------------------------------------------------------------------------
# Deterministic synthetic parameters (shapes from ZetaDecoder.__init__)
# -----------------------------------------------------------------------------
def make_params(key, latent_dim, dict_size):
    ks = jax.random.split(key, 12)

    def linear(kw, kb, fan_in, fan_out):
        bound = 1.0 / jnp.sqrt(fan_in)
        w = jax.random.uniform(kw, (fan_in, fan_out), jnp.float32, -bound, bound)
        b = jax.random.uniform(kb, (1, fan_out), jnp.float32, -bound, bound)
        return w, b

    w1, b1 = linear(ks[0], ks[1], latent_dim, H1)
    w2, b2 = linear(ks[2], ks[3], H1, H2)
    w3, b3 = linear(ks[4], ks[5], H2, dict_size)

    def bn_fold(kg, kb, km, kv, n):
        gamma = 1.0 + 0.1 * jax.random.normal(kg, (1, n), jnp.float32)
        beta = 0.1 * jax.random.normal(kb, (1, n), jnp.float32)
        mean = 0.1 * jax.random.normal(km, (1, n), jnp.float32)
        var = jnp.abs(1.0 + 0.1 * jax.random.normal(kv, (1, n), jnp.float32))
        scale = gamma / jnp.sqrt(var + BN_EPS)
        shift = beta - mean * scale
        return scale, shift

    s1, t1 = bn_fold(ks[6], ks[7], ks[8], ks[9], H1)
    s2, t2 = bn_fold(ks[10], ks[11], ks[6], ks[7], H2)  # reuse keys; deterministic

    return dict(w1=w1, b1=b1, s1=s1, t1=t1,
                w2=w2, b2=b2, s2=s2, t2=t2,
                w3=w3, b3=b3)


# -----------------------------------------------------------------------------
# References
# -----------------------------------------------------------------------------
def zeta_decoder_ref_f32(x, p):
    """PyTorch semantics (eval-mode BN), full f32."""
    h = jnp.maximum((x @ p["w1"] + p["b1"]) * p["s1"] + p["t1"], 0.0)
    h = jnp.maximum((h @ p["w2"] + p["b2"]) * p["s2"] + p["t2"], 0.0)
    return h @ p["w3"] + p["b3"]


def zeta_decoder_ref_bf16(x, prep):
    """Same folded / padded bf16 math as the kernel (tight-tolerance check)."""
    xb = x.astype(jnp.bfloat16)
    h = jnp.dot(xb, prep["w1f"], preferred_element_type=jnp.float32)
    h = jnp.maximum(h + prep["t1f"], 0.0).astype(jnp.bfloat16)
    h = jnp.dot(h, prep["w2f"], preferred_element_type=jnp.float32)
    h = jnp.maximum(h + prep["t2f"], 0.0).astype(jnp.bfloat16)
    out = jnp.dot(h, prep["w3p"], preferred_element_type=jnp.float32) + prep["b3p"]
    return out[:, :prep["dict_size"]]


if __name__ == "__main__":
    latent_dim = 32
    dict_size = 64
    batch = 8

    key = jax.random.PRNGKey(0)
    kx, kp = jax.random.split(key)
    x = jax.random.normal(kx, (batch, latent_dim), jnp.float32)
    raw = make_params(kp, latent_dim, dict_size)

    prep = prepare_params(raw, dict_size)

    out = zeta_decoder(x, prep)
    out = jax.block_until_ready(out)

    assert out.shape == (batch, dict_size)
    assert out.dtype == jnp.float32

    # Structural correctness vs. an identically-folded bf16 reference.
    ref_b = zeta_decoder_ref_bf16(x, prep)
    assert jnp.allclose(out, ref_b, atol=1e-3, rtol=1e-3), \
        float(jnp.max(jnp.abs(out - ref_b)))

    # Semantic correctness vs. the full-f32 PyTorch-equivalent reference
    # (tolerance reflects the deliberate bf16 matmul policy).
    ref_f = zeta_decoder_ref_f32(x, raw)
    assert jnp.allclose(out, ref_f, atol=2e-2, rtol=2e-2), \
        float(jnp.max(jnp.abs(out - ref_f)))

    print("KERNEL_OK")
</pallas_src>

<mosaic_0001>
module attributes {stable_mosaic.version = 11 : i64} {
  func.func @zeta_decoder_kernel(%arg0: i32, %arg1: i32, %arg2: memref<8x32xbf16, #tpu.memory_space<vmem>>, %arg3: memref<32x256xbf16, #tpu.memory_space<vmem>>, %arg4: memref<1x256xf32, #tpu.memory_space<vmem>>, %arg5: memref<256x1152xbf16, #tpu.memory_space<vmem>>, %arg6: memref<1x1152xf32, #tpu.memory_space<vmem>>, %arg7: memref<1152x128xbf16, #tpu.memory_space<vmem>>, %arg8: memref<1x128xf32, #tpu.memory_space<vmem>>, %arg9: memref<8x128xf32, #tpu.memory_space<vmem>>, %arg10: memref<8x1152xbf16, #tpu.memory_space<vmem>>) attributes {dimension_semantics = [#tpu.dimension_semantics<parallel>, #tpu.dimension_semantics<arbitrary>], iteration_bounds = array<i64: 1, 1>, scalar_prefetch = 0 : i64, scratch_operands = 1 : i64, tpu.core_type = #tpu.core_type<tc>, window_params = [{transform_indices = @transform_0, window_bounds = array<i64: 8, 32>}, {pipeline_mode = #tpu.pipeline_mode<synchronous>, transform_indices = @transform_1, window_bounds = array<i64: 32, 256>}, {pipeline_mode = #tpu.pipeline_mode<synchronous>, transform_indices = @transform_2, window_bounds = array<i64: 1, 256>}, {pipeline_mode = #tpu.pipeline_mode<synchronous>, transform_indices = @transform_3, window_bounds = array<i64: 256, 1152>}, {pipeline_mode = #tpu.pipeline_mode<synchronous>, transform_indices = @transform_4, window_bounds = array<i64: 1, 1152>}, {transform_indices = @transform_5, window_bounds = array<i64: 1152, 128>}, {transform_indices = @transform_6, window_bounds = array<i64: 1, 128>}, {transform_indices = @transform_7, window_bounds = array<i64: 8, 128>}]} {
    %c0_i32 = arith.constant 0 : i32
    %0 = arith.cmpi eq, %arg1, %c0_i32 : i32
    %1 = arith.extui %0 : i1 to i32
    %c0_i32_0 = arith.constant 0 : i32
    %2 = arith.cmpi ne, %1, %c0_i32_0 : i32
    scf.if %2 {
      %c0_8 = arith.constant 0 : index
      %c0_9 = arith.constant 0 : index
      %10 = vector.load %arg2[%c0_8, %c0_9] : memref<8x32xbf16, #tpu.memory_space<vmem>>, vector<8x32xbf16>
      %c0_10 = arith.constant 0 : index
      %c0_11 = arith.constant 0 : index
      %11 = vector.load %arg3[%c0_10, %c0_11] : memref<32x256xbf16, #tpu.memory_space<vmem>>, vector<32x256xbf16>
      %cst_12 = arith.constant dense<0.000000e+00> : vector<8x256xf32>
      %12 = tpu.matmul %10, %11, %cst_12 {dimension_numbers = #tpu.dot_dimension_numbers<[1], [0], [0], [1], [0, 0, 1, 1], [], []>} : vector<8x32xbf16>, vector<32x256xbf16>, vector<8x256xf32> -> vector<8x256xf32>
      %c0_13 = arith.constant 0 : index
      %c0_14 = arith.constant 0 : index
      %13 = vector.load %arg4[%c0_13, %c0_14] : memref<1x256xf32, #tpu.memory_space<vmem>>, vector<1x256xf32>
      %14 = vector.broadcast %13 : vector<1x256xf32> to vector<8x256xf32>
      %15 = arith.addf %12, %14 : vector<8x256xf32>
      %cst_15 = arith.constant 0.000000e+00 : f32
      %16 = vector.broadcast %cst_15 : f32 to vector<8x256xf32>
      %17 = arith.maximumf %15, %16 : vector<8x256xf32>
      %18 = arith.truncf %17 : vector<8x256xf32> to vector<8x256xbf16>
      %c0_16 = arith.constant 0 : index
      %c0_17 = arith.constant 0 : index
      %19 = vector.load %arg5[%c0_16, %c0_17] : memref<256x1152xbf16, #tpu.memory_space<vmem>>, vector<256x1152xbf16>
      %cst_18 = arith.constant dense<0.000000e+00> : vector<8x1152xf32>
      %20 = tpu.matmul %18, %19, %cst_18 {dimension_numbers = #tpu.dot_dimension_numbers<[1], [0], [0], [1], [0, 0, 1, 1], [], []>} : vector<8x256xbf16>, vector<256x1152xbf16>, vector<8x1152xf32> -> vector<8x1152xf32>
      %c0_19 = arith.constant 0 : index
      %c0_20 = arith.constant 0 : index
      %21 = vector.load %arg6[%c0_19, %c0_20] : memref<1x1152xf32, #tpu.memory_space<vmem>>, vector<1x1152xf32>
      %22 = vector.broadcast %21 : vector<1x1152xf32> to vector<8x1152xf32>
      %23 = arith.addf %20, %22 : vector<8x1152xf32>
      %cst_21 = arith.constant 0.000000e+00 : f32
      %24 = vector.broadcast %cst_21 : f32 to vector<8x1152xf32>
      %25 = arith.maximumf %23, %24 : vector<8x1152xf32>
      %26 = arith.truncf %25 : vector<8x1152xf32> to vector<8x1152xbf16>
      %c0_22 = arith.constant 0 : index
      %c0_23 = arith.constant 0 : index
      %27 = vector.load %arg10[%c0_22, %c0_23] : memref<8x1152xbf16, #tpu.memory_space<vmem>>, vector<8x1152xbf16>
      tpu.vector_store %arg10[%c0_22, %c0_23], %26 {strides = array<i32>} : memref<8x1152xbf16, #tpu.memory_space<vmem>>, vector<8x1152xbf16>,
    } else {
    }
    %c0 = arith.constant 0 : index
    %c0_1 = arith.constant 0 : index
    %3 = vector.load %arg10[%c0, %c0_1] : memref<8x1152xbf16, #tpu.memory_space<vmem>>, vector<8x1152xbf16>
    %c0_2 = arith.constant 0 : index
    %c0_3 = arith.constant 0 : index
    %4 = vector.load %arg7[%c0_2, %c0_3] : memref<1152x128xbf16, #tpu.memory_space<vmem>>, vector<1152x128xbf16>
    %cst = arith.constant dense<0.000000e+00> : vector<8x128xf32>
    %5 = tpu.matmul %3, %4, %cst {dimension_numbers = #tpu.dot_dimension_numbers<[1], [0], [0], [1], [0, 0, 1, 1], [], []>} : vector<8x1152xbf16>, vector<1152x128xbf16>, vector<8x128xf32> -> vector<8x128xf32>
    %c0_4 = arith.constant 0 : index
    %c0_5 = arith.constant 0 : index
    %6 = vector.load %arg8[%c0_4, %c0_5] : memref<1x128xf32, #tpu.memory_space<vmem>>, vector<1x128xf32>
    %7 = vector.broadcast %6 : vector<1x128xf32> to vector<8x128xf32>
    %8 = arith.addf %5, %7 : vector<8x128xf32>
    %c0_6 = arith.constant 0 : index
    %c0_7 = arith.constant 0 : index
    %9 = vector.load %arg9[%c0_6, %c0_7] : memref<8x128xf32, #tpu.memory_space<vmem>>, vector<8x128xf32>
    tpu.vector_store %arg9[%c0_6, %c0_7], %8 {strides = array<i32>} : memref<8x128xf32, #tpu.memory_space<vmem>>, vector<8x128xf32>,
    return
  }
  func.func @transform_0(%arg0: i32, %arg1: i32) -> (i32, i32) {
    %c0_i32 = arith.constant 0 : i32
    %c0_i32_0 = arith.constant 0 : i32
    return %arg0, %c0_i32 : i32, i32
  }
  func.func @transform_1(%arg0: i32, %arg1: i32) -> (i32, i32) {
    %c0_i32 = arith.constant 0 : i32
    %c0_i32_0 = arith.constant 0 : i32
    %c0_i32_1 = arith.constant 0 : i32
    return %c0_i32, %c0_i32_0 : i32, i32
  }
  func.func @transform_2(%arg0: i32, %arg1: i32) -> (i32, i32) {
    %c0_i32 = arith.constant 0 : i32
    %c0_i32_0 = arith.constant 0 : i32
    %c0_i32_1 = arith.constant 0 : i32
    return %c0_i32, %c0_i32_0 : i32, i32
  }
  func.func @transform_3(%arg0: i32, %arg1: i32) -> (i32, i32) {
    %c0_i32 = arith.constant 0 : i32
    %c0_i32_0 = arith.constant 0 : i32
    %c0_i32_1 = arith.constant 0 : i32
    return %c0_i32, %c0_i32_0 : i32, i32
  }
  func.func @transform_4(%arg0: i32, %arg1: i32) -> (i32, i32) {
    %c0_i32 = arith.constant 0 : i32
    %c0_i32_0 = arith.constant 0 : i32
    %c0_i32_1 = arith.constant 0 : i32
    return %c0_i32, %c0_i32_0 : i32, i32
  }
  func.func @transform_5(%arg0: i32, %arg1: i32) -> (i32, i32) {
    %c0_i32 = arith.constant 0 : i32
    %c0_i32_0 = arith.constant 0 : i32
    return %c0_i32, %arg1 : i32, i32
  }
  func.func @transform_6(%arg0: i32, %arg1: i32) -> (i32, i32) {
    %c0_i32 = arith.constant 0 : i32
    %c0_i32_0 = arith.constant 0 : i32
    return %c0_i32, %arg1 : i32, i32
  }
  func.func @transform_7(%arg0: i32, %arg1: i32) -> (i32, i32) {
    %c0_i32 = arith.constant 0 : i32
    return %arg0, %arg1 : i32, i32
  }
}

</mosaic_0001>

<llo_original>
// kernel: tpu_custom_call.1
$region0: #{tpu_custom_call.1}
  #allocation0 [shape = 'u32[]', space=smem, size = 0x4, offset = 0x4, fixed_abs, tag = 'smem constant byte address 0x4 - core index']
  #allocation1 [shape = 'u32[72,128]{1,0:T(1,128)}', space=vmem, size = 0x9000, scoped, tag = 'internal scratch']
  #allocation2 [shape = 'bf16[8,1152]{1,0:T(8,128)(2,1)}', space=vmem, size = 0x4800, scoped, tag = 'scratch operand']
  %s0 = inlined_call_operand.hbm [shape: bf16[8,32], index: 0, kind: input, shape index: {}]
  %s1 = inlined_call_operand.hbm [shape: bf16[32,256], index: 1, kind: input, shape index: {}]
  %s2 = inlined_call_operand.hbm [shape: f32[1,256], index: 2, kind: input, shape index: {}]
  %s3 = inlined_call_operand.hbm [shape: bf16[256,1152], index: 3, kind: input, shape index: {}]
  %s4 = inlined_call_operand.hbm [shape: f32[1,1152], index: 4, kind: input, shape index: {}]
  %s5 = inlined_call_operand.hbm [shape: bf16[1152,128], index: 5, kind: input, shape index: {}]
  %s6 = inlined_call_operand.vmem [shape: f32[1,128], index: 6, kind: input, shape index: {}]
  %s7 = inlined_call_operand.hbm [shape: f32[8,128], index: 7, kind: output, shape index: {}]
  %s8 = sld [smem:[#allocation0]]
  $region66: #{tpu_custom_call.1} parent=0
    _
  %s10 = ssub.s32 1, %s8
  %s11 = scalar_select 0, %s10, %s8
  $region1: #{tpu_custom_call.1} parent=0
    #allocation3 [shape = 'u8[2048]{0}', space=vmem, size = 0x800, scoped, tag = 'input window, operand 0, single buffered']
    #allocation4 [shape = 's32[1]{0}', space=sflag, size = 0x4, scoped, tag = 'scoped memory for tpu_custom_call.1']
    #allocation5 [shape = 's32[1]{0}', space=sflag, size = 0x4, scoped, tag = 'scoped memory for tpu_custom_call.1']
    #allocation6 [shape = 'u8[16384]{0}', space=vmem, size = 0x4000, scoped, tag = 'input window, operand 1, single buffered']
    #allocation7 [shape = 's32[1]{0}', space=sflag, size = 0x4, scoped, tag = 'scoped memory for tpu_custom_call.1']
    #allocation8 [shape = 'u8[1024]{0}', space=vmem, size = 0x400, scoped, tag = 'input window, operand 2, single buffered']
    #allocation9 [shape = 'u8[589824]{0}', space=vmem, size = 0x90000, scoped, tag = 'input window, operand 3, single buffered']
    #allocation10 [shape = 's32[1]{0}', space=sflag, size = 0x4, scoped, tag = 'scoped memory for tpu_custom_call.1']
    #allocation11 [shape = 'u8[4608]{0}', space=vmem, size = 0x1400, scoped, tag = 'input window, operand 4, single buffered']
    #allocation12 [shape = 'u8[294912]{0}', space=vmem, size = 0x48000, scoped, tag = 'input window, operand 5, single buffered']
    #allocation13 [shape = 's32[1]{0}', space=sflag, size = 0x4, scoped, tag = 'scoped memory for tpu_custom_call.1']
    #allocation14 [shape = 'u8[4096]{0}', space=vmem, size = 0x1000, scoped, tag = 'output window, operand 0, single buffered']
    %12 = vsyncpa [#allocation4], 0
    %13 = vsyncpa [#allocation7], 0
    %14 = vsyncpa [#allocation10], 0
    %15 = vsyncpa [#allocation13], 0
    %16 = vsyncpa [#allocation5], 0
    // Predicated region
    $region2: #{tpu_custom_call.1} parent=1 // pred_check
      _
    $region3: #{tpu_custom_call.1} parent=1 // pred_check_branch
      %18 = sbr.rel (0) target = $region5
    $region4: #{tpu_custom_call.1} parent=1 // pred_region
      %20 = vsyncadd [#allocation4], 0
      %s22 = sshll.u32 %s0, 4
      %s23 = int_to_ptr.hbm [resolvable:$true] %s22
      %s24 = sshll.u32 [#allocation3], 4
      %s25 = int_to_ptr.vmem [resolvable:$true] %s24
      %27 = dma.hbm_to_vmem [thread:$0]  %s23, 64, %s25, [#allocation4]
    $region5: #{tpu_custom_call.1} parent=1 // pred_fallthru
      _
    // Predicated region
    $region6: #{tpu_custom_call.1} parent=1 // pred_check
      _
    $region7: #{tpu_custom_call.1} parent=1 // pred_check_branch
      %29 = sbr.rel (0) target = $region9
    $region8: #{tpu_custom_call.1} parent=1 // pred_region
      %31 = vsyncadd [#allocation7], 0
      %s32 = sshll.u32 %s1, 4
      %s33 = int_to_ptr.hbm [resolvable:$true] %s32
      %s34 = sshll.u32 [#allocation6], 4
      %s35 = int_to_ptr.vmem [resolvable:$true] %s34
      %40 = dma.hbm_to_vmem [thread:$0]  %s33, 512, %s35, [#allocation7], 128, 128, 8
    $region9: #{tpu_custom_call.1} parent=1 // pred_fallthru
      _
    // Predicated region
    $region10: #{tpu_custom_call.1} parent=1 // pred_check
      _
    $region11: #{tpu_custom_call.1} parent=1 // pred_check_branch
      %42 = sbr.rel (0) target = $region13
    $region12: #{tpu_custom_call.1} parent=1 // pred_region
      %44 = vsyncadd [#allocation7], 0
      %s46 = sshll.u32 %s2, 4
      %s47 = int_to_ptr.hbm [resolvable:$true] %s46
      %s48 = sshll.u32 [#allocation8], 4
      %s49 = int_to_ptr.vmem [resolvable:$true] %s48
      %51 = dma.hbm_to_vmem [thread:$0]  %s47, 32, %s49, [#allocation7]
    $region13: #{tpu_custom_call.1} parent=1 // pred_fallthru
      _
    // Predicated region
    $region14: #{tpu_custom_call.1} parent=1 // pred_check
      _
    $region15: #{tpu_custom_call.1} parent=1 // pred_check_branch
      %53 = sbr.rel (0) target = $region17
    $region16: #{tpu_custom_call.1} parent=1 // pred_region
      %55 = vsyncadd [#allocation10], 0
      %s56 = sshll.u32 %s3, 4
      %s57 = int_to_ptr.hbm [resolvable:$true] %s56
      %s58 = sshll.u32 [#allocation9], 4
      %s59 = int_to_ptr.vmem [resolvable:$true] %s58
      %64 = dma.hbm_to_vmem [thread:$0]  %s57, 18432, %s59, [#allocation10], 576, 576, 36
    $region17: #{tpu_custom_call.1} parent=1 // pred_fallthru
      _
    // Predicated region
    $region18: #{tpu_custom_call.1} parent=1 // pred_check
      _
    $region19: #{tpu_custom_call.1} parent=1 // pred_check_branch
      %66 = sbr.rel (0) target = $region21
    $region20: #{tpu_custom_call.1} parent=1 // pred_region
      %68 = vsyncadd [#allocation10], 0
      %s70 = sshll.u32 %s4, 4
      %s71 = int_to_ptr.hbm [resolvable:$true] %s70
      %s72 = sshll.u32 [#allocation11], 4
      %s73 = int_to_ptr.vmem [resolvable:$true] %s72
      %75 = dma.hbm_to_vmem [thread:$0]  %s71, 144, %s73, [#allocation10]
    $region21: #{tpu_custom_call.1} parent=1 // pred_fallthru
      _
    // Predicated region
    $region22: #{tpu_custom_call.1} parent=1 // pred_check
      _
    $region23: #{tpu_custom_call.1} parent=1 // pred_check_branch
      %77 = sbr.rel (0) target = $region25
    $region24: #{tpu_custom_call.1} parent=1 // pred_region
      %79 = vsyncadd [#allocation13], 0
      %s80 = sshll.u32 %s5, 4
      %s81 = int_to_ptr.hbm [resolvable:$true] %s80
      %s82 = sshll.u32 [#allocation12], 4
      %s83 = int_to_ptr.vmem [resolvable:$true] %s82
      %88 = dma.hbm_to_vmem [thread:$0]  %s81, 9216, %s83, [#allocation13], 64, 64, 4
    $region25: #{tpu_custom_call.1} parent=1 // pred_fallthru
      _
    // Predicated region
    $region26: #{tpu_custom_call.1} parent=1 // pred_check
      _
    $region27: #{tpu_custom_call.1} parent=1 // pred_check_branch
      %90 = sbr.rel (0) target = $region29
    $region28: #{tpu_custom_call.1} parent=1 // pred_region
      _
    $region29: #{tpu_custom_call.1} parent=1 // pred_fallthru
      _
    // Predicated region
    $region30: #{tpu_custom_call.1} parent=1 // pred_check
      _
    $region31: #{tpu_custom_call.1} parent=1 // pred_check_branch
      %92 = sbr.rel (0) target = $region33
    $region32: #{tpu_custom_call.1} parent=1 // pred_region
      %94 = dma.done [#allocation4], 64
    $region33: #{tpu_custom_call.1} parent=1 // pred_fallthru
      _
    // Predicated region
    $region34: #{tpu_custom_call.1} parent=1 // pred_check
      _
    $region35: #{tpu_custom_call.1} parent=1 // pred_check_branch
      %96 = sbr.rel (0) target = $region37
    $region36: #{tpu_custom_call.1} parent=1 // pred_region
      %98 = dma.done [#allocation7], 512
    $region37: #{tpu_custom_call.1} parent=1 // pred_fallthru
      _
    // Predicated region
    $region38: #{tpu_custom_call.1} parent=1 // pred_check
      _
    $region39: #{tpu_custom_call.1} parent=1 // pred_check_branch
      %100 = sbr.rel (0) target = $region41
    $region40: #{tpu_custom_call.1} parent=1 // pred_region
      %102 = dma.done [#allocation7], 32
    $region41: #{tpu_custom_call.1} parent=1 // pred_fallthru
      _
    // Predicated region
    $region42: #{tpu_custom_call.1} parent=1 // pred_check
      _
    $region43: #{tpu_custom_call.1} parent=1 // pred_check_branch
      %104 = sbr.rel (0) target = $region45
    $region44: #{tpu_custom_call.1} parent=1 // pred_region
      %106 = dma.done [#allocation10], 18432
    $region45: #{tpu_custom_call.1} parent=1 // pred_fallthru
      _
    // Predicated region
    $region46: #{tpu_custom_call.1} parent=1 // pred_check
      _
    $region47: #{tpu_custom_call.1} parent=1 // pred_check_branch
      %108 = sbr.rel (0) target = $region49
    $region48: #{tpu_custom_call.1} parent=1 // pred_region
      %110 = dma.done [#allocation10], 144
    $region49: #{tpu_custom_call.1} parent=1 // pred_fallthru
      _
    // Predicated region
    $region50: #{tpu_custom_call.1} parent=1 // pred_check
      _
    $region51: #{tpu_custom_call.1} parent=1 // pred_check_branch
      %112 = sbr.rel (0) target = $region53
    $region52: #{tpu_custom_call.1} parent=1 // pred_region
      %114 = dma.done [#allocation13], 9216
    $region53: #{tpu_custom_call.1} parent=1 // pred_fallthru
      _
    %p116 = scmp.eq.s32.totalorder 0, 0
    // Predicated region
    $region54: #{tpu_custom_call.1} parent=1 // pred_check
      %p117 = pneg %p116
    $region55: #{tpu_custom_call.1} parent=1 // pred_check_branch
      %119 = sbr.rel (%p117) target = $region57
    $region56: #{tpu_custom_call.1} parent=1 // pred_region
      %v120 = vld [vmem:[#allocation3] sm:$0xf]
      %v121 = vld [vmem:[#allocation6] sm:$0xff]
      %v122 = vld [vmem:[#allocation6 + $0x8] sm:$0xff]
      %v123 = vld [vmem:[#allocation6 + $0x10] sm:$0xff]
      %v124 = vld [vmem:[#allocation6 + $0x18] sm:$0xff]
      %v125 = vld [vmem:[#allocation8] sm:$0x3]
      %v127 = vperm.slane %v125, 0
      %v128 = vperm.slane %v125, 1
      %v135 = vunpack.c.l.b16 %v121
      %v136 = vunpack.c.h.b16 %v121
      %v137 = vunpack.c.l.b16 %v122
      %v138 = vunpack.c.h.b16 %v122
      %v139 = vunpack.c.l.b16 %v123
      %v140 = vunpack.c.h.b16 %v123
      %v141 = vunpack.c.l.b16 %v124
      %v142 = vunpack.c.h.b16 %v124
      %v143 = vpack.c.b16 %v137, %v135
      %v144 = vpack.c.b16 %v138, %v136
      %v145 = vpack.c.b16 %v141, %v139
      %v146 = vpack.c.b16 %v142, %v140
      %vm151 = vcmask 261120
      %v153 = vsel %vm151, %v120, 0
      %155 = vmatpush.bf16.msra.mxu0 0
      %156 = vmatpush.bf16.msra.mxu0 0
      %157 = vmatpush.bf16.msra.mxu0 0
      %158 = vmatpush.bf16.msra.mxu0 0
      %159 = vmatpush.bf16.msra.mxu0 0
      %160 = vmatpush.bf16.msra.mxu0 0
      %161 = vmatpush.bf16.msra.mxu0 %v145
      %162 = vmatpush.bf16.msra.mxu0 %v143
      %163 = vmatmul.bf16.gmra.mxu0 %v153
      %v164 = vpop.f32.mrf.mxu0
      %v165 = vadd.f32 %v127, %v164
      %v166 = vpop.f32.mrf.mxu0
      %167 = vdwg.mxu0
      %168 = vmatpush.bf16.msra.mxu0 0
      %169 = vmatpush.bf16.msra.mxu0 0
      %170 = vmatpush.bf16.msra.mxu0 0
      %171 = vmatpush.bf16.msra.mxu0 0
      %172 = vmatpush.bf16.msra.mxu0 0
      %173 = vmatpush.bf16.msra.mxu0 0
      %174 = vmatpush.bf16.msra.mxu0 %v146
      %175 = vmatpush.bf16.msra.mxu0 %v144
      %176 = vmatmul.bf16.gmra.mxu0 %v153
      %v177 = vpop.f32.mrf.mxu0
      %v178 = vadd.f32 %v128, %v177
      %v179 = vpop.f32.mrf.mxu0
      %180 = vdwg.mxu0
      %v181 = vmax.f32 %v165, 0.0
      %v182 = vmax.f32 %v178, 0.0
      %v183 = vpack.c.bf16 %v181, %v181
      %v184 = vpack.c.bf16 %v182, %v182
      %v185 = vld [vmem:[#allocation9] sm:$0xff]
      %v186 = vld [vmem:[#allocation9 + $0x8] sm:$0xff]
      %v187 = vld [vmem:[#allocation9 + $0x10] sm:$0xff]
      %v188 = vld [vmem:[#allocation9 + $0x18] sm:$0xff]
      %v189 = vld [vmem:[#allocation9 + $0x20] sm:$0xf]
      %v190 = vld [vmem:[#allocation9 + $0x24] sm:$0xff]
      %v191 = vld [vmem:[#allocation9 + $0x2c] sm:$0xff]
      %v192 = vld [vmem:[#allocation9 + $0x34] sm:$0xff]
      %v193 = vld [vmem:[#allocation9 + $0x3c] sm:$0xff]
      %v194 = vld [vmem:[#allocation9 + $0x44] sm:$0xf]
      %v195 = vld [vmem:[#allocation9 + $0x48] sm:$0xff]
      %v196 = vld [vmem:[#allocation9 + $0x50] sm:$0xff]
      %v197 = vld [vmem:[#allocation9 + $0x58] sm:$0xff]
      %v198 = vld [vmem:[#allocation9 + $0x60] sm:$0xff]
      %v199 = vld [vmem:[#allocation9 + $0x68] sm:$0xf]
      %v200 = vld [vmem:[#allocation9 + $0x6c] sm:$0xff]
      %v201 = vld [vmem:[#allocation9 + $0x74] sm:$0xff]
      %v202 = vld [vmem:[#allocation9 + $0x7c] sm:$0xff]
      %v203 = vld [vmem:[#allocation9 + $0x84] sm:$0xff]
      %v204 = vld [vmem:[#allocation9 + $0x8c] sm:$0xf]
      %v205 = vld [vmem:[#allocation9 + $0x90] sm:$0xff]
      %v206 = vld [vmem:[#allocation9 + $0x98] sm:$0xff]
      %v207 = vld [vmem:[#allocation9 + $0xa0] sm:$0xff]
      %v208 = vld [vmem:[#allocation9 + $0xa8] sm:$0xff]
      %v209 = vld [vmem:[#allocation9 + $0xb0] sm:$0xf]
      %v210 = vld [vmem:[#allocation9 + $0xb4] sm:$0xff]
      %v211 = vld [vmem:[#allocation9 + $0xbc] sm:$0xff]
      %v212 = vld [vmem:[#allocation9 + $0xc4] sm:$0xff]
      %v213 = vld [vmem:[#allocation9 + $0xcc] sm:$0xff]
      %v214 = vld [vmem:[#allocation9 + $0xd4] sm:$0xf]
      %v215 = vld [vmem:[#allocation9 + $0xd8] sm:$0xff]
      %v216 = vld [vmem:[#allocation9 + $0xe0] sm:$0xff]
      %v217 = vld [vmem:[#allocation9 + $0xe8] sm:$0xff]
      %v218 = vld [vmem:[#allocation9 + $0xf0] sm:$0xff]
      %v219 = vld [vmem:[#allocation9 + $0xf8] sm:$0xf]
      %v220 = vld [vmem:[#allocation9 + $0xfc] sm:$0xff]
      %v221 = vld [vmem:[#allocation9 + $0x104] sm:$0xff]
      %v222 = vld [vmem:[#allocation9 + $0x10c] sm:$0xff]
      %v223 = vld [vmem:[#allocation9 + $0x114] sm:$0xff]
      %v224 = vld [vmem:[#allocation9 + $0x11c] sm:$0xf]
      %v225 = vld [vmem:[#allocation9 + $0x120] sm:$0xff]
      %v226 = vld [vmem:[#allocation9 + $0x128] sm:$0xff]
      %v227 = vld [vmem:[#allocation9 + $0x130] sm:$0xff]
      %v228 = vld [vmem:[#allocation9 + $0x138] sm:$0xff]
      %v229 = vld [vmem:[#allocation9 + $0x140] sm:$0xf]
      %v230 = vld [vmem:[#allocation9 + $0x144] sm:$0xff]
      %v231 = vld [vmem:[#allocation9 + $0x14c] sm:$0xff]
      %v232 = vld [vmem:[#allocation9 + $0x154] sm:$0xff]
      %v233 = vld [vmem:[#allocation9 + $0x15c] sm:$0xff]
      %v234 = vld [vmem:[#allocation9 + $0x164] sm:$0xf]
      %v235 = vld [vmem:[#allocation9 + $0x168] sm:$0xff]
      %v236 = vld [vmem:[#allocation9 + $0x170] sm:$0xff]
      %v237 = vld [vmem:[#allocation9 + $0x178] sm:$0xff]
      %v238 = vld [vmem:[#allocation9 + $0x180] sm:$0xff]
      %v239 = vld [vmem:[#allocation9 + $0x188] sm:$0xf]
      %v240 = vld [vmem:[#allocation9 + $0x18c] sm:$0xff]
      %v241 = vld [vmem:[#allocation9 + $0x194] sm:$0xff]
      %v242 = vld [vmem:[#allocation9 + $0x19c] sm:$0xff]
      %v243 = vld [vmem:[#allocation9 + $0x1a4] sm:$0xff]
      %v244 = vld [vmem:[#allocation9 + $0x1ac] sm:$0xf]
      %v245 = vld [vmem:[#allocation9 + $0x1b0] sm:$0xff]
      %v246 = vld [vmem:[#allocation9 + $0x1b8] sm:$0xff]
      %v247 = vld [vmem:[#allocation9 + $0x1c0] sm:$0xff]
      %v248 = vld [vmem:[#allocation9 + $0x1c8] sm:$0xff]
      %v249 = vld [vmem:[#allocation9 + $0x1d0] sm:$0xf]
      %v250 = vld [vmem:[#allocation9 + $0x1d4] sm:$0xff]
      %v251 = vld [vmem:[#allocation9 + $0x1dc] sm:$0xff]
      %v252 = vld [vmem:[#allocation9 + $0x1e4] sm:$0xff]
      %v253 = vld [vmem:[#allocation9 + $0x1ec] sm:$0xff]
      %v254 = vld [vmem:[#allocation9 + $0x1f4] sm:$0xf]
      %v255 = vld [vmem:[#allocation9 + $0x1f8] sm:$0xff]
      %v256 = vld [vmem:[#allocation9 + $0x200] sm:$0xff]
      %v257 = vld [vmem:[#allocation9 + $0x208] sm:$0xff]
      %v258 = vld [vmem:[#allocation9 + $0x210] sm:$0xff]
      %v259 = vld [vmem:[#allocation9 + $0x218] sm:$0xf]
      %v260 = vld [vmem:[#allocation9 + $0x21c] sm:$0xff]
      %v261 = vld [vmem:[#allocation9 + $0x224] sm:$0xff]
      %v262 = vld [vmem:[#allocation9 + $0x22c] sm:$0xff]
      %v263 = vld [vmem:[#allocation9 + $0x234] sm:$0xff]
      %v264 = vld [vmem:[#allocation9 + $0x23c] sm:$0xf]
      %v265 = vld [vmem:[#allocation9 + $0x240] sm:$0xff]
      %v266 = vld [vmem:[#allocation9 + $0x248] sm:$0xff]
      %v267 = vld [vmem:[#allocation9 + $0x250] sm:$0xff]
      %v268 = vld [vmem:[#allocation9 + $0x258] sm:$0xff]
      %v269 = vld [vmem:[#allocation9 + $0x260] sm:$0xf]
      %v270 = vld [vmem:[#allocation9 + $0x264] sm:$0xff]
      %v271 = vld [vmem:[#allocation9 + $0x26c] sm:$0xff]
      %v272 = vld [vmem:[#allocation9 + $0x274] sm:$0xff]
      %v273 = vld [vmem:[#allocation9 + $0x27c] sm:$0xff]
      %v274 = vld [vmem:[#allocation9 + $0x284] sm:$0xf]
      %v275 = vld [vmem:[#allocation9 + $0x288] sm:$0xff]
      %v276 = vld [vmem:[#allocation9 + $0x290] sm:$0xff]
      %v277 = vld [vmem:[#allocation9 + $0x298] sm:$0xff]
      %v278 = vld [vmem:[#allocation9 + $0x2a0] sm:$0xff]
      %v279 = vld [vmem:[#allocation9 + $0x2a8] sm:$0xf]
      %v280 = vld [vmem:[#allocation9 + $0x2ac] sm:$0xff]
      %v281 = vld [vmem:[#allocation9 + $0x2b4] sm:$0xff]
      %v282 = vld [vmem:[#allocation9 + $0x2bc] sm:$0xff]
      %v283 = vld [vmem:[#allocation9 + $0x2c4] sm:$0xff]
      %v284 = vld [vmem:[#allocation9 + $0x2cc] sm:$0xf]
      %v285 = vld [vmem:[#allocation9 + $0x2d0] sm:$0xff]
      %v286 = vld [vmem:[#allocation9 + $0x2d8] sm:$0xff]
      %v287 = vld [vmem:[#allocation9 + $0x2e0] sm:$0xff]
      %v288 = vld [vmem:[#allocation9 + $0x2e8] sm:$0xff]
      %v289 = vld [vmem:[#allocation9 + $0x2f0] sm:$0xf]
      %v290 = vld [vmem:[#allocation9 + $0x2f4] sm:$0xff]
      %v291 = vld [vmem:[#allocation9 + $0x2fc] sm:$0xff]
      %v292 = vld [vmem:[#allocation9 + $0x304] sm:$0xff]
      %v293 = vld [vmem:[#allocation9 + $0x30c] sm:$0xff]
      %v294 = vld [vmem:[#allocation9 + $0x314] sm:$0xf]
      %v295 = vld [vmem:[#allocation9 + $0x318] sm:$0xff]
      %v296 = vld [vmem:[#allocation9 + $0x320] sm:$0xff]
      %v297 = vld [vmem:[#allocation9 + $0x328] sm:$0xff]
      %v298 = vld [vmem:[#allocation9 + $0x330] sm:$0xff]
      %v299 = vld [vmem:[#allocation9 + $0x338] sm:$0xf]
      %v300 = vld [vmem:[#allocation9 + $0x33c] sm:$0xff]
      %v301 = vld [vmem:[#allocation9 + $0x344] sm:$0xff]
      %v302 = vld [vmem:[#allocation9 + $0x34c] sm:$0xff]
      %v303 = vld [vmem:[#allocation9 + $0x354] sm:$0xff]
      %v304 = vld [vmem:[#allocation9 + $0x35c] sm:$0xf]
      %v305 = vld [vmem:[#allocation9 + $0x360] sm:$0xff]
      %v306 = vld [vmem:[#allocation9 + $0x368] sm:$0xff]
      %v307 = vld [vmem:[#allocation9 + $0x370] sm:$0xff]
      %v308 = vld [vmem:[#allocation9 + $0x378] sm:$0xff]
      %v309 = vld [vmem:[#allocation9 + $0x380] sm:$0xf]
      %v310 = vld [vmem:[#allocation9 + $0x384] sm:$0xff]
      %v311 = vld [vmem:[#allocation9 + $0x38c] sm:$0xff]
      %v312 = vld [vmem:[#allocation9 + $0x394] sm:$0xff]
      %v313 = vld [vmem:[#allocation9 + $0x39c] sm:$0xff]
      %v314 = vld [vmem:[#allocation9 + $0x3a4] sm:$0xf]
      %v315 = vld [vmem:[#allocation9 + $0x3a8] sm:$0xff]
      %v316 = vld [vmem:[#allocation9 + $0x3b0] sm:$0xff]
      %v317 = vld [vmem:[#allocation9 + $0x3b8] sm:$0xff]
      %v318 = vld [vmem:[#allocation9 + $0x3c0] sm:$0xff]
      %v319 = vld [vmem:[#allocation9 + $0x3c8] sm:$0xf]
      %v320 = vld [vmem:[#allocation9 + $0x3cc] sm:$0xff]
      %v321 = vld [vmem:[#allocation9 + $0x3d4] sm:$0xff]
      %v322 = vld [vmem:[#allocation9 + $0x3dc] sm:$0xff]
      %v323 = vld [vmem:[#allocation9 + $0x3e4] sm:$0xff]
      %v324 = vld [vmem:[#allocation9 + $0x3ec] sm:$0xf]
      %v325 = vld [vmem:[#allocation9 + $0x3f0] sm:$0xff]
      %v326 = vld [vmem:[#allocation9 + $0x3f8] sm:$0xff]
      %v327 = vld [vmem:[#allocation9 + $0x400] sm:$0xff]
      %v328 = vld [vmem:[#allocation9 + $0x408] sm:$0xff]
      %v329 = vld [vmem:[#allocation9 + $0x410] sm:$0xf]
      %v330 = vld [vmem:[#allocation9 + $0x414] sm:$0xff]
      %v331 = vld [vmem:[#allocation9 + $0x41c] sm:$0xff]
      %v332 = vld [vmem:[#allocation9 + $0x424] sm:$0xff]
      %v333 = vld [vmem:[#allocation9 + $0x42c] sm:$0xff]
      %v334 = vld [vmem:[#allocation9 + $0x434] sm:$0xf]
      %v335 = vld [vmem:[#allocation9 + $0x438] sm:$0xff]
      %v336 = vld [vmem:[#allocation9 + $0x440] sm:$0xff]
      %v337 = vld [vmem:[#allocation9 + $0x448] sm:$0xff]
      %v338 = vld [vmem:[#allocation9 + $0x450] sm:$0xff]
      %v339 = vld [vmem:[#allocation9 + $0x458] sm:$0xf]
      %v340 = vld [vmem:[#allocation9 + $0x45c] sm:$0xff]
      %v341 = vld [vmem:[#allocation9 + $0x464] sm:$0xff]
      %v342 = vld [vmem:[#allocation9 + $0x46c] sm:$0xff]
      %v343 = vld [vmem:[#allocation9 + $0x474] sm:$0xff]
      %v344 = vld [vmem:[#allocation9 + $0x47c] sm:$0xf]
      %v345 = vld [vmem:[#allocation11] sm:$0xff]
      %v346 = vld [vmem:[#allocation11 + $0x8] sm:$0x1]
      %v349 = vperm.slane %v345, 0
      %v350 = vperm.slane %v345, 1
      %v351 = vperm.slane %v345, 2
      %v352 = vperm.slane %v345, 3
      %v353 = vperm.slane %v345, 4
      %v354 = vperm.slane %v345, 5
      %v355 = vperm.slane %v345, 6
      %v356 = vperm.slane %v345, 7
      %v357 = vperm.slane %v346, 0
      %v527 = vunpack.c.l.b16 %v185
      %v528 = vunpack.c.h.b16 %v185
      %v529 = vunpack.c.l.b16 %v186
      %v530 = vunpack.c.h.b16 %v186
      %v531 = vunpack.c.l.b16 %v187
      %v532 = vunpack.c.h.b16 %v187
      %v533 = vunpack.c.l.b16 %v188
      %v534 = vunpack.c.h.b16 %v188
      %v535 = vunpack.c.l.b16 %v189
      %v536 = vunpack.c.l.b16 %v190
      %v537 = vunpack.c.h.b16 %v190
      %v538 = vunpack.c.l.b16 %v191
      %v539 = vunpack.c.h.b16 %v191
      %v540 = vunpack.c.l.b16 %v192
      %v541 = vunpack.c.h.b16 %v192
      %v542 = vunpack.c.l.b16 %v193
      %v543 = vunpack.c.h.b16 %v193
      %v544 = vunpack.c.l.b16 %v194
      %v545 = vunpack.c.l.b16 %v195
      %v546 = vunpack.c.h.b16 %v195
      %v547 = vunpack.c.l.b16 %v196
      %v548 = vunpack.c.h.b16 %v196
      %v549 = vunpack.c.l.b16 %v197
      %v550 = vunpack.c.h.b16 %v197
      %v551 = vunpack.c.l.b16 %v198
      %v552 = vunpack.c.h.b16 %v198
      %v553 = vunpack.c.l.b16 %v199
      %v554 = vunpack.c.l.b16 %v200
      %v555 = vunpack.c.h.b16 %v200
      %v556 = vunpack.c.l.b16 %v201
      %v557 = vunpack.c.h.b16 %v201
      %v558 = vunpack.c.l.b16 %v202
      %v559 = vunpack.c.h.b16 %v202
      %v560 = vunpack.c.l.b16 %v203
      %v561 = vunpack.c.h.b16 %v203
      %v562 = vunpack.c.l.b16 %v204
      %v563 = vunpack.c.l.b16 %v205
      %v564 = vunpack.c.h.b16 %v205
      %v565 = vunpack.c.l.b16 %v206
      %v566 = vunpack.c.h.b16 %v206
      %v567 = vunpack.c.l.b16 %v207
      %v568 = vunpack.c.h.b16 %v207
      %v569 = vunpack.c.l.b16 %v208
      %v570 = vunpack.c.h.b16 %v208
      %v571 = vunpack.c.l.b16 %v209
      %v572 = vunpack.c.l.b16 %v210
      %v573 = vunpack.c.h.b16 %v210
      %v574 = vunpack.c.l.b16 %v211
      %v575 = vunpack.c.h.b16 %v211
      %v576 = vunpack.c.l.b16 %v212
      %v577 = vunpack.c.h.b16 %v212
      %v578 = vunpack.c.l.b16 %v213
      %v579 = vunpack.c.h.b16 %v213
      %v580 = vunpack.c.l.b16 %v214
      %v581 = vunpack.c.l.b16 %v215
      %v582 = vunpack.c.h.b16 %v215
      %v583 = vunpack.c.l.b16 %v216
      %v584 = vunpack.c.h.b16 %v216
      %v585 = vunpack.c.l.b16 %v217
      %v586 = vunpack.c.h.b16 %v217
      %v587 = vunpack.c.l.b16 %v218
      %v588 = vunpack.c.h.b16 %v218
      %v589 = vunpack.c.l.b16 %v219
      %v590 = vunpack.c.l.b16 %v220
      %v591 = vunpack.c.h.b16 %v220
      %v592 = vunpack.c.l.b16 %v221
      %v593 = vunpack.c.h.b16 %v221
      %v594 = vunpack.c.l.b16 %v222
      %v595 = vunpack.c.h.b16 %v222
      %v596 = vunpack.c.l.b16 %v223
      %v597 = vunpack.c.h.b16 %v223
      %v598 = vunpack.c.l.b16 %v224
      %v599 = vunpack.c.l.b16 %v225
      %v600 = vunpack.c.h.b16 %v225
      %v601 = vunpack.c.l.b16 %v226
      %v602 = vunpack.c.h.b16 %v226
      %v603 = vunpack.c.l.b16 %v227
      %v604 = vunpack.c.h.b16 %v227
      %v605 = vunpack.c.l.b16 %v228
      %v606 = vunpack.c.h.b16 %v228
      %v607 = vunpack.c.l.b16 %v229
      %v608 = vunpack.c.l.b16 %v230
      %v609 = vunpack.c.h.b16 %v230
      %v610 = vunpack.c.l.b16 %v231
      %v611 = vunpack.c.h.b16 %v231
      %v612 = vunpack.c.l.b16 %v232
      %v613 = vunpack.c.h.b16 %v232
      %v614 = vunpack.c.l.b16 %v233
      %v615 = vunpack.c.h.b16 %v233
      %v616 = vunpack.c.l.b16 %v234
      %v617 = vunpack.c.l.b16 %v235
      %v618 = vunpack.c.h.b16 %v235
      %v619 = vunpack.c.l.b16 %v236
      %v620 = vunpack.c.h.b16 %v236
      %v621 = vunpack.c.l.b16 %v237
      %v622 = vunpack.c.h.b16 %v237
      %v623 = vunpack.c.l.b16 %v238
      %v624 = vunpack.c.h.b16 %v238
      %v625 = vunpack.c.l.b16 %v239
      %v626 = vunpack.c.l.b16 %v240
      %v627 = vunpack.c.h.b16 %v240
      %v628 = vunpack.c.l.b16 %v241
      %v629 = vunpack.c.h.b16 %v241
      %v630 = vunpack.c.l.b16 %v242
      %v631 = vunpack.c.h.b16 %v242
      %v632 = vunpack.c.l.b16 %v243
      %v633 = vunpack.c.h.b16 %v243
      %v634 = vunpack.c.l.b16 %v244
      %v635 = vunpack.c.l.b16 %v245
      %v636 = vunpack.c.h.b16 %v245
      %v637 = vunpack.c.l.b16 %v246
      %v638 = vunpack.c.h.b16 %v246
      %v639 = vunpack.c.l.b16 %v247
      %v640 = vunpack.c.h.b16 %v247
      %v641 = vunpack.c.l.b16 %v248
      %v642 = vunpack.c.h.b16 %v248
      %v643 = vunpack.c.l.b16 %v249
      %v644 = vunpack.c.l.b16 %v250
      %v645 = vunpack.c.h.b16 %v250
      %v646 = vunpack.c.l.b16 %v251
      %v647 = vunpack.c.h.b16 %v251
      %v648 = vunpack.c.l.b16 %v252
      %v649 = vunpack.c.h.b16 %v252
      %v650 = vunpack.c.l.b16 %v253
      %v651 = vunpack.c.h.b16 %v253
      %v652 = vunpack.c.l.b16 %v254
      %v653 = vunpack.c.l.b16 %v255
      %v654 = vunpack.c.h.b16 %v255
      %v655 = vunpack.c.l.b16 %v256
      %v656 = vunpack.c.h.b16 %v256
      %v657 = vunpack.c.l.b16 %v257
      %v658 = vunpack.c.h.b16 %v257
      %v659 = vunpack.c.l.b16 %v258
      %v660 = vunpack.c.h.b16 %v258
      %v661 = vunpack.c.l.b16 %v259
      %v662 = vunpack.c.l.b16 %v260
      %v663 = vunpack.c.h.b16 %v260
      %v664 = vunpack.c.l.b16 %v261
      %v665 = vunpack.c.h.b16 %v261
      %v666 = vunpack.c.l.b16 %v262
      %v667 = vunpack.c.h.b16 %v262
      %v668 = vunpack.c.l.b16 %v263
      %v669 = vunpack.c.h.b16 %v263
      %v670 = vunpack.c.l.b16 %v264
      %v671 = vunpack.c.l.b16 %v265
      %v672 = vunpack.c.h.b16 %v265
      %v673 = vunpack.c.l.b16 %v266
      %v674 = vunpack.c.h.b16 %v266
      %v675 = vunpack.c.l.b16 %v267
      %v676 = vunpack.c.h.b16 %v267
      %v677 = vunpack.c.l.b16 %v268
      %v678 = vunpack.c.h.b16 %v268
      %v679 = vunpack.c.l.b16 %v269
      %v680 = vunpack.c.l.b16 %v270
      %v681 = vunpack.c.h.b16 %v270
      %v682 = vunpack.c.l.b16 %v271
      %v683 = vunpack.c.h.b16 %v271
      %v684 = vunpack.c.l.b16 %v272
      %v685 = vunpack.c.h.b16 %v272
      %v686 = vunpack.c.l.b16 %v273
      %v687 = vunpack.c.h.b16 %v273
      %v688 = vunpack.c.l.b16 %v274
      %v689 = vunpack.c.l.b16 %v275
      %v690 = vunpack.c.h.b16 %v275
      %v691 = vunpack.c.l.b16 %v276
      %v692 = vunpack.c.h.b16 %v276
      %v693 = vunpack.c.l.b16 %v277
      %v694 = vunpack.c.h.b16 %v277
      %v695 = vunpack.c.l.b16 %v278
      %v696 = vunpack.c.h.b16 %v278
      %v697 = vunpack.c.l.b16 %v279
      %v698 = vunpack.c.l.b16 %v280
      %v699 = vunpack.c.h.b16 %v280
      %v700 = vunpack.c.l.b16 %v281
      %v701 = vunpack.c.h.b16 %v281
      %v702 = vunpack.c.l.b16 %v282
      %v703 = vunpack.c.h.b16 %v282
      %v704 = vunpack.c.l.b16 %v283
      %v705 = vunpack.c.h.b16 %v283
      %v706 = vunpack.c.l.b16 %v284
      %v707 = vunpack.c.l.b16 %v285
      %v708 = vunpack.c.h.b16 %v285
      %v709 = vunpack.c.l.b16 %v286
      %v710 = vunpack.c.h.b16 %v286
      %v711 = vunpack.c.l.b16 %v287
      %v712 = vunpack.c.h.b16 %v287
      %v713 = vunpack.c.l.b16 %v288
      %v714 = vunpack.c.h.b16 %v288
      %v715 = vunpack.c.l.b16 %v289
      %v716 = vunpack.c.l.b16 %v290
      %v717 = vunpack.c.h.b16 %v290
      %v718 = vunpack.c.l.b16 %v291
      %v719 = vunpack.c.h.b16 %v291
      %v720 = vunpack.c.l.b16 %v292
      %v721 = vunpack.c.h.b16 %v292
      %v722 = vunpack.c.l.b16 %v293
      %v723 = vunpack.c.h.b16 %v293
      %v724 = vunpack.c.l.b16 %v294
      %v725 = vunpack.c.l.b16 %v295
      %v726 = vunpack.c.h.b16 %v295
      %v727 = vunpack.c.l.b16 %v296
      %v728 = vunpack.c.h.b16 %v296
      %v729 = vunpack.c.l.b16 %v297
      %v730 = vunpack.c.h.b16 %v297
      %v731 = vunpack.c.l.b16 %v298
      %v732 = vunpack.c.h.b16 %v298
      %v733 = vunpack.c.l.b16 %v299
      %v734 = vunpack.c.l.b16 %v300
      %v735 = vunpack.c.h.b16 %v300
      %v736 = vunpack.c.l.b16 %v301
      %v737 = vunpack.c.h.b16 %v301
      %v738 = vunpack.c.l.b16 %v302
      %v739 = vunpack.c.h.b16 %v302
      %v740 = vunpack.c.l.b16 %v303
      %v741 = vunpack.c.h.b16 %v303
      %v742 = vunpack.c.l.b16 %v304
      %v743 = vunpack.c.l.b16 %v305
      %v744 = vunpack.c.h.b16 %v305
      %v745 = vunpack.c.l.b16 %v306
      %v746 = vunpack.c.h.b16 %v306
      %v747 = vunpack.c.l.b16 %v307
      %v748 = vunpack.c.h.b16 %v307
      %v749 = vunpack.c.l.b16 %v308
      %v750 = vunpack.c.h.b16 %v308
      %v751 = vunpack.c.l.b16 %v309
      %v752 = vunpack.c.l.b16 %v310
      %v753 = vunpack.c.h.b16 %v310
      %v754 = vunpack.c.l.b16 %v311
      %v755 = vunpack.c.h.b16 %v311
      %v756 = vunpack.c.l.b16 %v312
      %v757 = vunpack.c.h.b16 %v312
      %v758 = vunpack.c.l.b16 %v313
      %v759 = vunpack.c.h.b16 %v313
      %v760 = vunpack.c.l.b16 %v314
      %v761 = vunpack.c.l.b16 %v315
      %v762 = vunpack.c.h.b16 %v315
      %v763 = vunpack.c.l.b16 %v316
      %v764 = vunpack.c.h.b16 %v316
      %v765 = vunpack.c.l.b16 %v317
      %v766 = vunpack.c.h.b16 %v317
      %v767 = vunpack.c.l.b16 %v318
      %v768 = vunpack.c.h.b16 %v318
      %v769 = vunpack.c.l.b16 %v319
      %v770 = vunpack.c.l.b16 %v320
      %v771 = vunpack.c.h.b16 %v320
      %v772 = vunpack.c.l.b16 %v321
      %v773 = vunpack.c.h.b16 %v321
      %v774 = vunpack.c.l.b16 %v322
      %v775 = vunpack.c.h.b16 %v322
      %v776 = vunpack.c.l.b16 %v323
      %v777 = vunpack.c.h.b16 %v323
      %v778 = vunpack.c.l.b16 %v324
      %v779 = vunpack.c.l.b16 %v325
      %v780 = vunpack.c.h.b16 %v325
      %v781 = vunpack.c.l.b16 %v326
      %v782 = vunpack.c.h.b16 %v326
      %v783 = vunpack.c.l.b16 %v327
      %v784 = vunpack.c.h.b16 %v327
      %v785 = vunpack.c.l.b16 %v328
      %v786 = vunpack.c.h.b16 %v328
      %v787 = vunpack.c.l.b16 %v329
      %v788 = vunpack.c.l.b16 %v330
      %v789 = vunpack.c.h.b16 %v330
      %v790 = vunpack.c.l.b16 %v331
      %v791 = vunpack.c.h.b16 %v331
      %v792 = vunpack.c.l.b16 %v332
      %v793 = vunpack.c.h.b16 %v332
      %v794 = vunpack.c.l.b16 %v333
      %v795 = vunpack.c.h.b16 %v333
      %v796 = vunpack.c.l.b16 %v334
      %v797 = vunpack.c.l.b16 %v335
      %v798 = vunpack.c.h.b16 %v335
      %v799 = vunpack.c.l.b16 %v336
      %v800 = vunpack.c.h.b16 %v336
      %v801 = vunpack.c.l.b16 %v337
      %v802 = vunpack.c.h.b16 %v337
      %v803 = vunpack.c.l.b16 %v338
      %v804 = vunpack.c.h.b16 %v338
      %v805 = vunpack.c.l.b16 %v339
      %v806 = vunpack.c.l.b16 %v340
      %v807 = vunpack.c.h.b16 %v340
      %v808 = vunpack.c.l.b16 %v341
      %v809 = vunpack.c.h.b16 %v341
      %v810 = vunpack.c.l.b16 %v342
      %v811 = vunpack.c.h.b16 %v342
      %v812 = vunpack.c.l.b16 %v343
      %v813 = vunpack.c.h.b16 %v343
      %v814 = vunpack.c.l.b16 %v344
      %v815 = vpack.c.b16 %v536, %v527
      %v816 = vpack.c.b16 %v537, %v528
      %v817 = vpack.c.b16 %v538, %v529
      %v818 = vpack.c.b16 %v539, %v530
      %v819 = vpack.c.b16 %v540, %v531
      %v820 = vpack.c.b16 %v541, %v532
      %v821 = vpack.c.b16 %v542, %v533
      %v822 = vpack.c.b16 %v543, %v534
      %v823 = vpack.c.b16 %v544, %v535
      %v824 = vpack.c.b16 %v554, %v545
      %v825 = vpack.c.b16 %v555, %v546
      %v826 = vpack.c.b16 %v556, %v547
      %v827 = vpack.c.b16 %v557, %v548
      %v828 = vpack.c.b16 %v558, %v549
      %v829 = vpack.c.b16 %v559, %v550
      %v830 = vpack.c.b16 %v560, %v551
      %v831 = vpack.c.b16 %v561, %v552
      %v832 = vpack.c.b16 %v562, %v553
      %v833 = vpack.c.b16 %v572, %v563
      %v834 = vpack.c.b16 %v573, %v564
      %v835 = vpack.c.b16 %v574, %v565
      %v836 = vpack.c.b16 %v575, %v566
      %v837 = vpack.c.b16 %v576, %v567
      %v838 = vpack.c.b16 %v577, %v568
      %v839 = vpack.c.b16 %v578, %v569
      %v840 = vpack.c.b16 %v579, %v570
      %v841 = vpack.c.b16 %v580, %v571
      %v842 = vpack.c.b16 %v590, %v581
      %v843 = vpack.c.b16 %v591, %v582
      %v844 = vpack.c.b16 %v592, %v583
      %v845 = vpack.c.b16 %v593, %v584
      %v846 = vpack.c.b16 %v594, %v585
      %v847 = vpack.c.b16 %v595, %v586
      %v848 = vpack.c.b16 %v596, %v587
      %v849 = vpack.c.b16 %v597, %v588
      %v850 = vpack.c.b16 %v598, %v589
      %v851 = vpack.c.b16 %v608, %v599
      %v852 = vpack.c.b16 %v609, %v600
      %v853 = vpack.c.b16 %v610, %v601
      %v854 = vpack.c.b16 %v611, %v602
      %v855 = vpack.c.b16 %v612, %v603
      %v856 = vpack.c.b16 %v613, %v604
      %v857 = vpack.c.b16 %v614, %v605
      %v858 = vpack.c.b16 %v615, %v606
      %v859 = vpack.c.b16 %v616, %v607
      %v860 = vpack.c.b16 %v626, %v617
      %v861 = vpack.c.b16 %v627, %v618
      %v862 = vpack.c.b16 %v628, %v619
      %v863 = vpack.c.b16 %v629, %v620
      %v864 = vpack.c.b16 %v630, %v621
      %v865 = vpack.c.b16 %v631, %v622
      %v866 = vpack.c.b16 %v632, %v623
      %v867 = vpack.c.b16 %v633, %v624
      %v868 = vpack.c.b16 %v634, %v625
      %v869 = vpack.c.b16 %v644, %v635
      %v870 = vpack.c.b16 %v645, %v636
      %v871 = vpack.c.b16 %v646, %v637
      %v872 = vpack.c.b16 %v647, %v638
      %v873 = vpack.c.b16 %v648, %v639
      %v874 = vpack.c.b16 %v649, %v640
      %v875 = vpack.c.b16 %v650, %v641
      %v876 = vpack.c.b16 %v651, %v642
      %v877 = vpack.c.b16 %v652, %v643
      %v878 = vpack.c.b16 %v662, %v653
      %v879 = vpack.c.b16 %v663, %v654
      %v880 = vpack.c.b16 %v664, %v655
      %v881 = vpack.c.b16 %v665, %v656
      %v882 = vpack.c.b16 %v666, %v657
      %v883 = vpack.c.b16 %v667, %v658
      %v884 = vpack.c.b16 %v668, %v659
      %v885 = vpack.c.b16 %v669, %v660
      %v886 = vpack.c.b16 %v670, %v661
      %v887 = vpack.c.b16 %v680, %v671
      %v888 = vpack.c.b16 %v681, %v672
      %v889 = vpack.c.b16 %v682, %v673
      %v890 = vpack.c.b16 %v683, %v674
      %v891 = vpack.c.b16 %v684, %v675
      %v892 = vpack.c.b16 %v685, %v676
      %v893 = vpack.c.b16 %v686, %v677
      %v894 = vpack.c.b16 %v687, %v678
      %v895 = vpack.c.b16 %v688, %v679
      %v896 = vpack.c.b16 %v698, %v689
      %v897 = vpack.c.b16 %v699, %v690
      %v898 = vpack.c.b16 %v700, %v691
      %v899 = vpack.c.b16 %v701, %v692
      %v900 = vpack.c.b16 %v702, %v693
      %v901 = vpack.c.b16 %v703, %v694
      %v902 = vpack.c.b16 %v704, %v695
      %v903 = vpack.c.b16 %v705, %v696
      %v904 = vpack.c.b16 %v706, %v697
      %v905 = vpack.c.b16 %v716, %v707
      %v906 = vpack.c.b16 %v717, %v708
      %v907 = vpack.c.b16 %v718, %v709
      %v908 = vpack.c.b16 %v719, %v710
      %v909 = vpack.c.b16 %v720, %v711
      %v910 = vpack.c.b16 %v721, %v712
      %v911 = vpack.c.b16 %v722, %v713
      %v912 = vpack.c.b16 %v723, %v714
      %v913 = vpack.c.b16 %v724, %v715
      %v914 = vpack.c.b16 %v734, %v725
      %v915 = vpack.c.b16 %v735, %v726
      %v916 = vpack.c.b16 %v736, %v727
      %v917 = vpack.c.b16 %v737, %v728
      %v918 = vpack.c.b16 %v738, %v729
      %v919 = vpack.c.b16 %v739, %v730
      %v920 = vpack.c.b16 %v740, %v731
      %v921 = vpack.c.b16 %v741, %v732
      %v922 = vpack.c.b16 %v742, %v733
      %v923 = vpack.c.b16 %v752, %v743
      %v924 = vpack.c.b16 %v753, %v744
      %v925 = vpack.c.b16 %v754, %v745
      %v926 = vpack.c.b16 %v755, %v746
      %v927 = vpack.c.b16 %v756, %v747
      %v928 = vpack.c.b16 %v757, %v748
      %v929 = vpack.c.b16 %v758, %v749
      %v930 = vpack.c.b16 %v759, %v750
      %v931 = vpack.c.b16 %v760, %v751
      %v932 = vpack.c.b16 %v770, %v761
      %v933 = vpack.c.b16 %v771, %v762
      %v934 = vpack.c.b16 %v772, %v763
      %v935 = vpack.c.b16 %v773, %v764
      %v936 = vpack.c.b16 %v774, %v765
      %v937 = vpack.c.b16 %v775, %v766
      %v938 = vpack.c.b16 %v776, %v767
      %v939 = vpack.c.b16 %v777, %v768
      %v940 = vpack.c.b16 %v778, %v769
      %v941 = vpack.c.b16 %v788, %v779
      %v942 = vpack.c.b16 %v789, %v780
      %v943 = vpack.c.b16 %v790, %v781
      %v944 = vpack.c.b16 %v791, %v782
      %v945 = vpack.c.b16 %v792, %v783
      %v946 = vpack.c.b16 %v793, %v784
      %v947 = vpack.c.b16 %v794, %v785
      %v948 = vpack.c.b16 %v795, %v786
      %v949 = vpack.c.b16 %v796, %v787
      %v950 = vpack.c.b16 %v806, %v797
      %v951 = vpack.c.b16 %v807, %v798
      %v952 = vpack.c.b16 %v808, %v799
      %v953 = vpack.c.b16 %v809, %v800
      %v954 = vpack.c.b16 %v810, %v801
      %v955 = vpack.c.b16 %v811, %v802
      %v956 = vpack.c.b16 %v812, %v803
      %v957 = vpack.c.b16 %v813, %v804
      %v958 = vpack.c.b16 %v814, %v805
      %1103 = vmatpush.bf16.msra.mxu0 %v878
      %1104 = vmatpush.bf16.msra.mxu0 %v869
      %1105 = vmatpush.bf16.msra.mxu0 %v860
      %1106 = vmatpush.bf16.msra.mxu0 %v851
      %1107 = vmatpush.bf16.msra.mxu0 %v842
      %1108 = vmatpush.bf16.msra.mxu0 %v833
      %1109 = vmatpush.bf16.msra.mxu0 %v824
      %1110 = vmatpush.bf16.msra.mxu0 %v815
      %1111 = vmatmul.bf16.gmra.mxu0 %v183
      %v1112 = vpop.f32.mrf.mxu0
      %v1113 = vadd.f32 %v349, %v1112
      %v1114 = vpop.f32.mrf.mxu0
      %1115 = vdwg.mxu0
      %1116 = vmatpush.bf16.msra.mxu0 %v950
      %1117 = vmatpush.bf16.msra.mxu0 %v941
      %1118 = vmatpush.bf16.msra.mxu0 %v932
      %1119 = vmatpush.bf16.msra.mxu0 %v923
      %1120 = vmatpush.bf16.msra.mxu0 %v914
      %1121 = vmatpush.bf16.msra.mxu0 %v905
      %1122 = vmatpush.bf16.msra.mxu0 %v896
      %1123 = vmatpush.bf16.msra.mxu0 %v887
      %1124 = vmatmul.bf16.gmra.mxu0 %v184
      %v1125 = vpop.f32.mrf.mxu0
      %v1126 = vadd.f32 %v1113, %v1125
      %v1127 = vpop.f32.mrf.mxu0
      %1128 = vdwg.mxu0
      %1129 = vmatpush.bf16.msra.mxu0 %v879
      %1130 = vmatpush.bf16.msra.mxu0 %v870
      %1131 = vmatpush.bf16.msra.mxu0 %v861
      %1132 = vmatpush.bf16.msra.mxu0 %v852
      %1133 = vmatpush.bf16.msra.mxu0 %v843
      %1134 = vmatpush.bf16.msra.mxu0 %v834
      %1135 = vmatpush.bf16.msra.mxu0 %v825
      %1136 = vmatpush.bf16.msra.mxu0 %v816
      %1137 = vmatmul.bf16.gmra.mxu0 %v183
      %v1138 = vpop.f32.mrf.mxu0
      %v1139 = vadd.f32 %v350, %v1138
      %v1140 = vpop.f32.mrf.mxu0
      %1141 = vdwg.mxu0
      %1142 = vmatpush.bf16.msra.mxu0 %v951
      %1143 = vmatpush.bf16.msra.mxu0 %v942
      %1144 = vmatpush.bf16.msra.mxu0 %v933
      %1145 = vmatpush.bf16.msra.mxu0 %v924
      %1146 = vmatpush.bf16.msra.mxu0 %v915
      %1147 = vmatpush.bf16.msra.mxu0 %v906
      %1148 = vmatpush.bf16.msra.mxu0 %v897
      %1149 = vmatpush.bf16.msra.mxu0 %v888
      %1150 = vmatmul.bf16.gmra.mxu0 %v184
      %v1151 = vpop.f32.mrf.mxu0
      %v1152 = vadd.f32 %v1139, %v1151
      %v1153 = vpop.f32.mrf.mxu0
      %1154 = vdwg.mxu0
      %1155 = vmatpush.bf16.msra.mxu0 %v880
      %1156 = vmatpush.bf16.msra.mxu0 %v871
      %1157 = vmatpush.bf16.msra.mxu0 %v862
      %1158 = vmatpush.bf16.msra.mxu0 %v853
      %1159 = vmatpush.bf16.msra.mxu0 %v844
      %1160 = vmatpush.bf16.msra.mxu0 %v835
      %1161 = vmatpush.bf16.msra.mxu0 %v826
      %1162 = vmatpush.bf16.msra.mxu0 %v817
      %1163 = vmatmul.bf16.gmra.mxu0 %v183
      %v1164 = vpop.f32.mrf.mxu0
      %v1165 = vadd.f32 %v351, %v1164
      %v1166 = vpop.f32.mrf.mxu0
      %1167 = vdwg.mxu0
      %1168 = vmatpush.bf16.msra.mxu0 %v952
      %1169 = vmatpush.bf16.msra.mxu0 %v943
      %1170 = vmatpush.bf16.msra.mxu0 %v934
      %1171 = vmatpush.bf16.msra.mxu0 %v925
      %1172 = vmatpush.bf16.msra.mxu0 %v916
      %1173 = vmatpush.bf16.msra.mxu0 %v907
      %1174 = vmatpush.bf16.msra.mxu0 %v898
      %1175 = vmatpush.bf16.msra.mxu0 %v889
      %1176 = vmatmul.bf16.gmra.mxu0 %v184
      %v1177 = vpop.f32.mrf.mxu0
      %v1178 = vadd.f32 %v1165, %v1177
      %v1179 = vpop.f32.mrf.mxu0
      %1180 = vdwg.mxu0
      %1181 = vmatpush.bf16.msra.mxu0 %v881
      %1182 = vmatpush.bf16.msra.mxu0 %v872
      %1183 = vmatpush.bf16.msra.mxu0 %v863
      %1184 = vmatpush.bf16.msra.mxu0 %v854
      %1185 = vmatpush.bf16.msra.mxu0 %v845
      %1186 = vmatpush.bf16.msra.mxu0 %v836
      %1187 = vmatpush.bf16.msra.mxu0 %v827
      %1188 = vmatpush.bf16.msra.mxu0 %v818
      %1189 = vmatmul.bf16.gmra.mxu0 %v183
      %v1190 = vpop.f32.mrf.mxu0
      %v1191 = vadd.f32 %v352, %v1190
      %v1192 = vpop.f32.mrf.mxu0
      %1193 = vdwg.mxu0
      %1194 = vmatpush.bf16.msra.mxu0 %v953
      %1195 = vmatpush.bf16.msra.mxu0 %v944
      %1196 = vmatpush.bf16.msra.mxu0 %v935
      %1197 = vmatpush.bf16.msra.mxu0 %v926
      %1198 = vmatpush.bf16.msra.mxu0 %v917
      %1199 = vmatpush.bf16.msra.mxu0 %v908
      %1200 = vmatpush.bf16.msra.mxu0 %v899
      %1201 = vmatpush.bf16.msra.mxu0 %v890
      %1202 = vmatmul.bf16.gmra.mxu0 %v184
      %v1203 = vpop.f32.mrf.mxu0
      %v1204 = vadd.f32 %v1191, %v1203
      %v1205 = vpop.f32.mrf.mxu0
      %1206 = vdwg.mxu0
      %1207 = vmatpush.bf16.msra.mxu0 %v882
      %1208 = vmatpush.bf16.msra.mxu0 %v873
      %1209 = vmatpush.bf16.msra.mxu0 %v864
      %1210 = vmatpush.bf16.msra.mxu0 %v855
      %1211 = vmatpush.bf16.msra.mxu0 %v846
      %1212 = vmatpush.bf16.msra.mxu0 %v837
      %1213 = vmatpush.bf16.msra.mxu0 %v828
      %1214 = vmatpush.bf16.msra.mxu0 %v819
      %1215 = vmatmul.bf16.gmra.mxu0 %v183
      %v1216 = vpop.f32.mrf.mxu0
      %v1217 = vadd.f32 %v353, %v1216
      %v1218 = vpop.f32.mrf.mxu0
      %1219 = vdwg.mxu0
      %1220 = vmatpush.bf16.msra.mxu0 %v954
      %1221 = vmatpush.bf16.msra.mxu0 %v945
      %1222 = vmatpush.bf16.msra.mxu0 %v936
      %1223 = vmatpush.bf16.msra.mxu0 %v927
      %1224 = vmatpush.bf16.msra.mxu0 %v918
      %1225 = vmatpush.bf16.msra.mxu0 %v909
      %1226 = vmatpush.bf16.msra.mxu0 %v900
      %1227 = vmatpush.bf16.msra.mxu0 %v891
      %1228 = vmatmul.bf16.gmra.mxu0 %v184
      %v1229 = vpop.f32.mrf.mxu0
      %v1230 = vadd.f32 %v1217, %v1229
      %v1231 = vpop.f32.mrf.mxu0
      %1232 = vdwg.mxu0
      %1233 = vmatpush.bf16.msra.mxu0 %v883
      %1234 = vmatpush.bf16.msra.mxu0 %v874
      %1235 = vmatpush.bf16.msra.mxu0 %v865
      %1236 = vmatpush.bf16.msra.mxu0 %v856
      %1237 = vmatpush.bf16.msra.mxu0 %v847
      %1238 = vmatpush.bf16.msra.mxu0 %v838
      %1239 = vmatpush.bf16.msra.mxu0 %v829
      %1240 = vmatpush.bf16.msra.mxu0 %v820
      %1241 = vmatmul.bf16.gmra.mxu0 %v183
      %v1242 = vpop.f32.mrf.mxu0
      %v1243 = vadd.f32 %v354, %v1242
      %v1244 = vpop.f32.mrf.mxu0
      %1245 = vdwg.mxu0
      %1246 = vmatpush.bf16.msra.mxu0 %v955
      %1247 = vmatpush.bf16.msra.mxu0 %v946
      %1248 = vmatpush.bf16.msra.mxu0 %v937
      %1249 = vmatpush.bf16.msra.mxu0 %v928
      %1250 = vmatpush.bf16.msra.mxu0 %v919
      %1251 = vmatpush.bf16.msra.mxu0 %v910
      %1252 = vmatpush.bf16.msra.mxu0 %v901
      %1253 = vmatpush.bf16.msra.mxu0 %v892
      %1254 = vmatmul.bf16.gmra.mxu0 %v184
      %v1255 = vpop.f32.mrf.mxu0
      %v1256 = vadd.f32 %v1243, %v1255
      %v1257 = vpop.f32.mrf.mxu0
      %1258 = vdwg.mxu0
      %1259 = vmatpush.bf16.msra.mxu0 %v884
      %1260 = vmatpush.bf16.msra.mxu0 %v875
      %1261 = vmatpush.bf16.msra.mxu0 %v866
      %1262 = vmatpush.bf16.msra.mxu0 %v857
      %1263 = vmatpush.bf16.msra.mxu0 %v848
      %1264 = vmatpush.bf16.msra.mxu0 %v839
      %1265 = vmatpush.bf16.msra.mxu0 %v830
      %1266 = vmatpush.bf16.msra.mxu0 %v821
      %1267 = vmatmul.bf16.gmra.mxu0 %v183
      %v1268 = vpop.f32.mrf.mxu0
      %v1269 = vadd.f32 %v355, %v1268
      %v1270 = vpop.f32.mrf.mxu0
      %1271 = vdwg.mxu0
      %1272 = vmatpush.bf16.msra.mxu0 %v956
      %1273 = vmatpush.bf16.msra.mxu0 %v947
      %1274 = vmatpush.bf16.msra.mxu0 %v938
      %1275 = vmatpush.bf16.msra.mxu0 %v929
      %1276 = vmatpush.bf16.msra.mxu0 %v920
      %1277 = vmatpush.bf16.msra.mxu0 %v911
      %1278 = vmatpush.bf16.msra.mxu0 %v902
      %1279 = vmatpush.bf16.msra.mxu0 %v893
      %1280 = vmatmul.bf16.gmra.mxu0 %v184
      %v1281 = vpop.f32.mrf.mxu0
      %v1282 = vadd.f32 %v1269, %v1281
      %v1283 = vpop.f32.mrf.mxu0
      %1284 = vdwg.mxu0
      %1285 = vmatpush.bf16.msra.mxu0 %v885
      %1286 = vmatpush.bf16.msra.mxu0 %v876
      %1287 = vmatpush.bf16.msra.mxu0 %v867
      %1288 = vmatpush.bf16.msra.mxu0 %v858
      %1289 = vmatpush.bf16.msra.mxu0 %v849
      %1290 = vmatpush.bf16.msra.mxu0 %v840
      %1291 = vmatpush.bf16.msra.mxu0 %v831
      %1292 = vmatpush.bf16.msra.mxu0 %v822
      %1293 = vmatmul.bf16.gmra.mxu0 %v183
      %v1294 = vpop.f32.mrf.mxu0
      %v1295 = vadd.f32 %v356, %v1294
      %v1296 = vpop.f32.mrf.mxu0
      %1297 = vdwg.mxu0
      %1298 = vmatpush.bf16.msra.mxu0 %v957
      %1299 = vmatpush.bf16.msra.mxu0 %v948
      %1300 = vmatpush.bf16.msra.mxu0 %v939
      %1301 = vmatpush.bf16.msra.mxu0 %v930
      %1302 = vmatpush.bf16.msra.mxu0 %v921
      %1303 = vmatpush.bf16.msra.mxu0 %v912
      %1304 = vmatpush.bf16.msra.mxu0 %v903
      %1305 = vmatpush.bf16.msra.mxu0 %v894
      %1306 = vmatmul.bf16.gmra.mxu0 %v184
      %v1307 = vpop.f32.mrf.mxu0
      %v1308 = vadd.f32 %v1295, %v1307
      %v1309 = vpop.f32.mrf.mxu0
      %1310 = vdwg.mxu0
      %1311 = vmatpush.bf16.msra.mxu0 %v886
      %1312 = vmatpush.bf16.msra.mxu0 %v877
      %1313 = vmatpush.bf16.msra.mxu0 %v868
      %1314 = vmatpush.bf16.msra.mxu0 %v859
      %1315 = vmatpush.bf16.msra.mxu0 %v850
      %1316 = vmatpush.bf16.msra.mxu0 %v841
      %1317 = vmatpush.bf16.msra.mxu0 %v832
      %1318 = vmatpush.bf16.msra.mxu0 %v823
      %1319 = vmatmul.bf16.gmra.mxu0 %v183
      %v1320 = vpop.f32.mrf.mxu0
      %v1321 = vadd.f32 %v357, %v1320
      %v1322 = vpop.f32.mrf.mxu0
      %1323 = vdwg.mxu0
      %1324 = vmatpush.bf16.msra.mxu0 %v958
      %1325 = vmatpush.bf16.msra.mxu0 %v949
      %1326 = vmatpush.bf16.msra.mxu0 %v940
      %1327 = vmatpush.bf16.msra.mxu0 %v931
      %1328 = vmatpush.bf16.msra.mxu0 %v922
      %1329 = vmatpush.bf16.msra.mxu0 %v913
      %1330 = vmatpush.bf16.msra.mxu0 %v904
      %1331 = vmatpush.bf16.msra.mxu0 %v895
      %1332 = vmatmul.bf16.gmra.mxu0 %v184
      %v1333 = vpop.f32.mrf.mxu0
      %v1334 = vadd.f32 %v1321, %v1333
      %v1335 = vpop.f32.mrf.mxu0
      %1336 = vdwg.mxu0
      %v1337 = vmax.f32 %v1126, 0.0
      %v1338 = vmax.f32 %v1152, 0.0
      %v1339 = vmax.f32 %v1178, 0.0
      %v1340 = vmax.f32 %v1204, 0.0
      %v1341 = vmax.f32 %v1230, 0.0
      %v1342 = vmax.f32 %v1256, 0.0
      %v1343 = vmax.f32 %v1282, 0.0
      %v1344 = vmax.f32 %v1308, 0.0
      %v1345 = vmax.f32 %v1334, 0.0
      %v1346 = vpack.c.bf16 %v1338, %v1337
      %v1347 = vpack.c.bf16 %v1340, %v1339
      %v1348 = vpack.c.bf16 %v1342, %v1341
      %v1349 = vpack.c.bf16 %v1344, %v1343
      %v1350 = vpack.c.bf16 %v1345, %v1345
      %1351 = vst [vmem:[#allocation2] sm:$0xff] %v1346
      %1352 = vst [vmem:[#allocation2 + $0x8] sm:$0xff] %v1347
      %1353 = vst [vmem:[#allocation2 + $0x10] sm:$0xff] %v1348
      %1354 = vst [vmem:[#allocation2 + $0x18] sm:$0xff] %v1349
      %1355 = vst [vmem:[#allocation2 + $0x20] sm:$0xf] %v1350
    $region57: #{tpu_custom_call.1} parent=1 // pred_fallthru
      _
    %v1356 = vld [vmem:[#allocation2] sm:$0xff]
    %v1357 = vld [vmem:[#allocation2 + $0x8] sm:$0xff]
    %v1358 = vld [vmem:[#allocation2 + $0x10] sm:$0xff]
    %v1359 = vld [vmem:[#allocation2 + $0x18] sm:$0xff]
    %v1360 = vld [vmem:[#allocation2 + $0x20] sm:$0xf]
    %v1361 = vld [vmem:[#allocation12] sm:$0xf]
    %v1362 = vld [vmem:[#allocation12 + $0x4] sm:$0xf]
    %v1363 = vld [vmem:[#allocation12 + $0x8] sm:$0xf]
    %v1364 = vld [vmem:[#allocation12 + $0xc] sm:$0xf]
    %v1365 = vld [vmem:[#allocation12 + $0x10] sm:$0xf]
    %v1366 = vld [vmem:[#allocation12 + $0x14] sm:$0xf]
    %v1367 = vld [vmem:[#allocation12 + $0x18] sm:$0xf]
    %v1368 = vld [vmem:[#allocation12 + $0x1c] sm:$0xf]
    %v1369 = vld [vmem:[#allocation12 + $0x20] sm:$0xf]
    %v1370 = vld [vmem:[#allocation12 + $0x24] sm:$0xf]
    %v1371 = vld [vmem:[#allocation12 + $0x28] sm:$0xf]
    %v1372 = vld [vmem:[#allocation12 + $0x2c] sm:$0xf]
    %v1373 = vld [vmem:[#allocation12 + $0x30] sm:$0xf]
    %v1374 = vld [vmem:[#allocation12 + $0x34] sm:$0xf]
    %v1375 = vld [vmem:[#allocation12 + $0x38] sm:$0xf]
    %v1376 = vld [vmem:[#allocation12 + $0x3c] sm:$0xf]
    %v1377 = vld [vmem:[#allocation12 + $0x40] sm:$0xf]
    %v1378 = vld [vmem:[#allocation12 + $0x44] sm:$0xf]
    %v1379 = vld [vmem:[#allocation12 + $0x48] sm:$0xf]
    %v1380 = vld [vmem:[#allocation12 + $0x4c] sm:$0xf]
    %v1381 = vld [vmem:[#allocation12 + $0x50] sm:$0xf]
    %v1382 = vld [vmem:[#allocation12 + $0x54] sm:$0xf]
    %v1383 = vld [vmem:[#allocation12 + $0x58] sm:$0xf]
    %v1384 = vld [vmem:[#allocation12 + $0x5c] sm:$0xf]
    %v1385 = vld [vmem:[#allocation12 + $0x60] sm:$0xf]
    %v1386 = vld [vmem:[#allocation12 + $0x64] sm:$0xf]
    %v1387 = vld [vmem:[#allocation12 + $0x68] sm:$0xf]
    %v1388 = vld [vmem:[#allocation12 + $0x6c] sm:$0xf]
    %v1389 = vld [vmem:[#allocation12 + $0x70] sm:$0xf]
    %v1390 = vld [vmem:[#allocation12 + $0x74] sm:$0xf]
    %v1391 = vld [vmem:[#allocation12 + $0x78] sm:$0xf]
    %v1392 = vld [vmem:[#allocation12 + $0x7c] sm:$0xf]
    %v1393 = vld [vmem:[#allocation12 + $0x80] sm:$0xf]
    %v1394 = vld [vmem:[#allocation12 + $0x84] sm:$0xf]
    %v1395 = vld [vmem:[#allocation12 + $0x88] sm:$0xf]
    %v1396 = vld [vmem:[#allocation12 + $0x8c] sm:$0xf]
    %v1397 = vld [vmem:[#allocation12 + $0x90] sm:$0xf]
    %v1398 = vld [vmem:[#allocation12 + $0x94] sm:$0xf]
    %v1399 = vld [vmem:[#allocation12 + $0x98] sm:$0xf]
    %v1400 = vld [vmem:[#allocation12 + $0x9c] sm:$0xf]
    %v1401 = vld [vmem:[#allocation12 + $0xa0] sm:$0xf]
    %v1402 = vld [vmem:[#allocation12 + $0xa4] sm:$0xf]
    %v1403 = vld [vmem:[#allocation12 + $0xa8] sm:$0xf]
    %v1404 = vld [vmem:[#allocation12 + $0xac] sm:$0xf]
    %v1405 = vld [vmem:[#allocation12 + $0xb0] sm:$0xf]
    %v1406 = vld [vmem:[#allocation12 + $0xb4] sm:$0xf]
    %v1407 = vld [vmem:[#allocation12 + $0xb8] sm:$0xf]
    %v1408 = vld [vmem:[#allocation12 + $0xbc] sm:$0xf]
    %v1409 = vld [vmem:[#allocation12 + $0xc0] sm:$0xf]
    %v1410 = vld [vmem:[#allocation12 + $0xc4] sm:$0xf]
    %v1411 = vld [vmem:[#allocation12 + $0xc8] sm:$0xf]
    %v1412 = vld [vmem:[#allocation12 + $0xcc] sm:$0xf]
    %v1413 = vld [vmem:[#allocation12 + $0xd0] sm:$0xf]
    %v1414 = vld [vmem:[#allocation12 + $0xd4] sm:$0xf]
    %v1415 = vld [vmem:[#allocation12 + $0xd8] sm:$0xf]
    %v1416 = vld [vmem:[#allocation12 + $0xdc] sm:$0xf]
    %v1417 = vld [vmem:[#allocation12 + $0xe0] sm:$0xf]
    %v1418 = vld [vmem:[#allocation12 + $0xe4] sm:$0xf]
    %v1419 = vld [vmem:[#allocation12 + $0xe8] sm:$0xf]
    %v1420 = vld [vmem:[#allocation12 + $0xec] sm:$0xf]
    %v1421 = vld [vmem:[#allocation12 + $0xf0] sm:$0xf]
    %v1422 = vld [vmem:[#allocation12 + $0xf4] sm:$0xf]
    %v1423 = vld [vmem:[#allocation12 + $0xf8] sm:$0xf]
    %v1424 = vld [vmem:[#allocation12 + $0xfc] sm:$0xf]
    %v1425 = vld [vmem:[#allocation12 + $0x100] sm:$0xf]
    %v1426 = vld [vmem:[#allocation12 + $0x104] sm:$0xf]
    %v1427 = vld [vmem:[#allocation12 + $0x108] sm:$0xf]
    %v1428 = vld [vmem:[#allocation12 + $0x10c] sm:$0xf]
    %v1429 = vld [vmem:[#allocation12 + $0x110] sm:$0xf]
    %v1430 = vld [vmem:[#allocation12 + $0x114] sm:$0xf]
    %v1431 = vld [vmem:[#allocation12 + $0x118] sm:$0xf]
    %v1432 = vld [vmem:[#allocation12 + $0x11c] sm:$0xf]
    %v1433 = vld [vmem:[#allocation12 + $0x120] sm:$0xf]
    %v1434 = vld [vmem:[#allocation12 + $0x124] sm:$0xf]
    %v1435 = vld [vmem:[#allocation12 + $0x128] sm:$0xf]
    %v1436 = vld [vmem:[#allocation12 + $0x12c] sm:$0xf]
    %v1437 = vld [vmem:[#allocation12 + $0x130] sm:$0xf]
    %v1438 = vld [vmem:[#allocation12 + $0x134] sm:$0xf]
    %v1439 = vld [vmem:[#allocation12 + $0x138] sm:$0xf]
    %v1440 = vld [vmem:[#allocation12 + $0x13c] sm:$0xf]
    %v1441 = vld [vmem:[#allocation12 + $0x140] sm:$0xf]
    %v1442 = vld [vmem:[#allocation12 + $0x144] sm:$0xf]
    %v1443 = vld [vmem:[#allocation12 + $0x148] sm:$0xf]
    %v1444 = vld [vmem:[#allocation12 + $0x14c] sm:$0xf]
    %v1445 = vld [vmem:[#allocation12 + $0x150] sm:$0xf]
    %v1446 = vld [vmem:[#allocation12 + $0x154] sm:$0xf]
    %v1447 = vld [vmem:[#allocation12 + $0x158] sm:$0xf]
    %v1448 = vld [vmem:[#allocation12 + $0x15c] sm:$0xf]
    %v1449 = vld [vmem:[#allocation12 + $0x160] sm:$0xf]
    %v1450 = vld [vmem:[#allocation12 + $0x164] sm:$0xf]
    %v1451 = vld [vmem:[#allocation12 + $0x168] sm:$0xf]
    %v1452 = vld [vmem:[#allocation12 + $0x16c] sm:$0xf]
    %v1453 = vld [vmem:[#allocation12 + $0x170] sm:$0xf]
    %v1454 = vld [vmem:[#allocation12 + $0x174] sm:$0xf]
    %v1455 = vld [vmem:[#allocation12 + $0x178] sm:$0xf]
    %v1456 = vld [vmem:[#allocation12 + $0x17c] sm:$0xf]
    %v1457 = vld [vmem:[#allocation12 + $0x180] sm:$0xf]
    %v1458 = vld [vmem:[#allocation12 + $0x184] sm:$0xf]
    %v1459 = vld [vmem:[#allocation12 + $0x188] sm:$0xf]
    %v1460 = vld [vmem:[#allocation12 + $0x18c] sm:$0xf]
    %v1461 = vld [vmem:[#allocation12 + $0x190] sm:$0xf]
    %v1462 = vld [vmem:[#allocation12 + $0x194] sm:$0xf]
    %v1463 = vld [vmem:[#allocation12 + $0x198] sm:$0xf]
    %v1464 = vld [vmem:[#allocation12 + $0x19c] sm:$0xf]
    %v1465 = vld [vmem:[#allocation12 + $0x1a0] sm:$0xf]
    %v1466 = vld [vmem:[#allocation12 + $0x1a4] sm:$0xf]
    %v1467 = vld [vmem:[#allocation12 + $0x1a8] sm:$0xf]
    %v1468 = vld [vmem:[#allocation12 + $0x1ac] sm:$0xf]
    %v1469 = vld [vmem:[#allocation12 + $0x1b0] sm:$0xf]
    %v1470 = vld [vmem:[#allocation12 + $0x1b4] sm:$0xf]
    %v1471 = vld [vmem:[#allocation12 + $0x1b8] sm:$0xf]
    %v1472 = vld [vmem:[#allocation12 + $0x1bc] sm:$0xf]
    %v1473 = vld [vmem:[#allocation12 + $0x1c0] sm:$0xf]
    %v1474 = vld [vmem:[#allocation12 + $0x1c4] sm:$0xf]
    %v1475 = vld [vmem:[#allocation12 + $0x1c8] sm:$0xf]
    %v1476 = vld [vmem:[#allocation12 + $0x1cc] sm:$0xf]
    %v1477 = vld [vmem:[#allocation12 + $0x1d0] sm:$0xf]
    %v1478 = vld [vmem:[#allocation12 + $0x1d4] sm:$0xf]
    %v1479 = vld [vmem:[#allocation12 + $0x1d8] sm:$0xf]
    %v1480 = vld [vmem:[#allocation12 + $0x1dc] sm:$0xf]
    %v1481 = vld [vmem:[#allocation12 + $0x1e0] sm:$0xf]
    %v1482 = vld [vmem:[#allocation12 + $0x1e4] sm:$0xf]
    %v1483 = vld [vmem:[#allocation12 + $0x1e8] sm:$0xf]
    %v1484 = vld [vmem:[#allocation12 + $0x1ec] sm:$0xf]
    %v1485 = vld [vmem:[#allocation12 + $0x1f0] sm:$0xf]
    %v1486 = vld [vmem:[#allocation12 + $0x1f4] sm:$0xf]
    %v1487 = vld [vmem:[#allocation12 + $0x1f8] sm:$0xf]
    %v1488 = vld [vmem:[#allocation12 + $0x1fc] sm:$0xf]
    %v1489 = vld [vmem:[#allocation12 + $0x200] sm:$0xf]
    %v1490 = vld [vmem:[#allocation12 + $0x204] sm:$0xf]
    %v1491 = vld [vmem:[#allocation12 + $0x208] sm:$0xf]
    %v1492 = vld [vmem:[#allocation12 + $0x20c] sm:$0xf]
    %v1493 = vld [vmem:[#allocation12 + $0x210] sm:$0xf]
    %v1494 = vld [vmem:[#allocation12 + $0x214] sm:$0xf]
    %v1495 = vld [vmem:[#allocation12 + $0x218] sm:$0xf]
    %v1496 = vld [vmem:[#allocation12 + $0x21c] sm:$0xf]
    %v1497 = vld [vmem:[#allocation12 + $0x220] sm:$0xf]
    %v1498 = vld [vmem:[#allocation12 + $0x224] sm:$0xf]
    %v1499 = vld [vmem:[#allocation12 + $0x228] sm:$0xf]
    %v1500 = vld [vmem:[#allocation12 + $0x22c] sm:$0xf]
    %v1501 = vld [vmem:[#allocation12 + $0x230] sm:$0xf]
    %v1502 = vld [vmem:[#allocation12 + $0x234] sm:$0xf]
    %v1503 = vld [vmem:[#allocation12 + $0x238] sm:$0xf]
    %v1504 = vld [vmem:[#allocation12 + $0x23c] sm:$0xf]
    %v1505 = vld [vmem:[%s6] sm:$0x1]
    %v1507 = vperm.slane %v1505, 0
    %v1514 = vunpack.c.l.b16 %v1356
    %v1515 = vunpack.c.h.b16 %v1356
    %v1516 = vunpack.c.l.b16 %v1357
    %v1517 = vunpack.c.h.b16 %v1357
    %v1518 = vunpack.c.l.b16 %v1358
    %v1519 = vunpack.c.h.b16 %v1358
    %v1520 = vunpack.c.l.b16 %v1359
    %v1521 = vunpack.c.h.b16 %v1359
    %v1522 = vunpack.c.l.b16 %v1360
    %v1523 = vpack.c.b16 %v1514, %v1514
    %v1524 = vpack.c.b16 %v1515, %v1515
    %v1525 = vpack.c.b16 %v1516, %v1516
    %v1526 = vpack.c.b16 %v1517, %v1517
    %v1527 = vpack.c.b16 %v1518, %v1518
    %v1528 = vpack.c.b16 %v1519, %v1519
    %v1529 = vpack.c.b16 %v1520, %v1520
    %v1530 = vpack.c.b16 %v1521, %v1521
    %v1531 = vpack.c.b16 %v1522, %v1522
    %v1685 = vunpack.c.l.b16 %v1361
    %v1686 = vunpack.c.l.b16 %v1362
    %v1687 = vunpack.c.l.b16 %v1363
    %v1688 = vunpack.c.l.b16 %v1364
    %v1689 = vunpack.c.l.b16 %v1365
    %v1690 = vunpack.c.l.b16 %v1366
    %v1691 = vunpack.c.l.b16 %v1367
    %v1692 = vunpack.c.l.b16 %v1368
    %v1693 = vunpack.c.l.b16 %v1369
    %v1694 = vunpack.c.l.b16 %v1370
    %v1695 = vunpack.c.l.b16 %v1371
    %v1696 = vunpack.c.l.b16 %v1372
    %v1697 = vunpack.c.l.b16 %v1373
    %v1698 = vunpack.c.l.b16 %v1374
    %v1699 = vunpack.c.l.b16 %v1375
    %v1700 = vunpack.c.l.b16 %v1376
    %v1701 = vunpack.c.l.b16 %v1377
    %v1702 = vunpack.c.l.b16 %v1378
    %v1703 = vunpack.c.l.b16 %v1379
    %v1704 = vunpack.c.l.b16 %v1380
    %v1705 = vunpack.c.l.b16 %v1381
    %v1706 = vunpack.c.l.b16 %v1382
    %v1707 = vunpack.c.l.b16 %v1383
    %v1708 = vunpack.c.l.b16 %v1384
    %v1709 = vunpack.c.l.b16 %v1385
    %v1710 = vunpack.c.l.b16 %v1386
    %v1711 = vunpack.c.l.b16 %v1387
    %v1712 = vunpack.c.l.b16 %v1388
    %v1713 = vunpack.c.l.b16 %v1389
    %v1714 = vunpack.c.l.b16 %v1390
    %v1715 = vunpack.c.l.b16 %v1391
    %v1716 = vunpack.c.l.b16 %v1392
    %v1717 = vunpack.c.l.b16 %v1393
    %v1718 = vunpack.c.l.b16 %v1394
    %v1719 = vunpack.c.l.b16 %v1395
    %v1720 = vunpack.c.l.b16 %v1396
    %v1721 = vunpack.c.l.b16 %v1397
    %v1722 = vunpack.c.l.b16 %v1398
    %v1723 = vunpack.c.l.b16 %v1399
    %v1724 = vunpack.c.l.b16 %v1400
    %v1725 = vunpack.c.l.b16 %v1401
    %v1726 = vunpack.c.l.b16 %v1402
    %v1727 = vunpack.c.l.b16 %v1403
    %v1728 = vunpack.c.l.b16 %v1404
    %v1729 = vunpack.c.l.b16 %v1405
    %v1730 = vunpack.c.l.b16 %v1406
    %v1731 = vunpack.c.l.b16 %v1407
    %v1732 = vunpack.c.l.b16 %v1408
    %v1733 = vunpack.c.l.b16 %v1409
    %v1734 = vunpack.c.l.b16 %v1410
    %v1735 = vunpack.c.l.b16 %v1411
    %v1736 = vunpack.c.l.b16 %v1412
    %v1737 = vunpack.c.l.b16 %v1413
    %v1738 = vunpack.c.l.b16 %v1414
    %v1739 = vunpack.c.l.b16 %v1415
    %v1740 = vunpack.c.l.b16 %v1416
    %v1741 = vunpack.c.l.b16 %v1417
    %v1742 = vunpack.c.l.b16 %v1418
    %v1743 = vunpack.c.l.b16 %v1419
    %v1744 = vunpack.c.l.b16 %v1420
    %v1745 = vunpack.c.l.b16 %v1421
    %v1746 = vunpack.c.l.b16 %v1422
    %v1747 = vunpack.c.l.b16 %v1423
    %v1748 = vunpack.c.l.b16 %v1424
    %v1749 = vunpack.c.l.b16 %v1425
    %v1750 = vunpack.c.l.b16 %v1426
    %v1751 = vunpack.c.l.b16 %v1427
    %v1752 = vunpack.c.l.b16 %v1428
    %v1753 = vunpack.c.l.b16 %v1429
    %v1754 = vunpack.c.l.b16 %v1430
    %v1755 = vunpack.c.l.b16 %v1431
    %v1756 = vunpack.c.l.b16 %v1432
    %v1757 = vunpack.c.l.b16 %v1433
    %v1758 = vunpack.c.l.b16 %v1434
    %v1759 = vunpack.c.l.b16 %v1435
    %v1760 = vunpack.c.l.b16 %v1436
    %v1761 = vunpack.c.l.b16 %v1437
    %v1762 = vunpack.c.l.b16 %v1438
    %v1763 = vunpack.c.l.b16 %v1439
    %v1764 = vunpack.c.l.b16 %v1440
    %v1765 = vunpack.c.l.b16 %v1441
    %v1766 = vunpack.c.l.b16 %v1442
    %v1767 = vunpack.c.l.b16 %v1443
    %v1768 = vunpack.c.l.b16 %v1444
    %v1769 = vunpack.c.l.b16 %v1445
    %v1770 = vunpack.c.l.b16 %v1446
    %v1771 = vunpack.c.l.b16 %v1447
    %v1772 = vunpack.c.l.b16 %v1448
    %v1773 = vunpack.c.l.b16 %v1449
    %v1774 = vunpack.c.l.b16 %v1450
    %v1775 = vunpack.c.l.b16 %v1451
    %v1776 = vunpack.c.l.b16 %v1452
    %v1777 = vunpack.c.l.b16 %v1453
    %v1778 = vunpack.c.l.b16 %v1454
    %v1779 = vunpack.c.l.b16 %v1455
    %v1780 = vunpack.c.l.b16 %v1456
    %v1781 = vunpack.c.l.b16 %v1457
    %v1782 = vunpack.c.l.b16 %v1458
    %v1783 = vunpack.c.l.b16 %v1459
    %v1784 = vunpack.c.l.b16 %v1460
    %v1785 = vunpack.c.l.b16 %v1461
    %v1786 = vunpack.c.l.b16 %v1462
    %v1787 = vunpack.c.l.b16 %v1463
    %v1788 = vunpack.c.l.b16 %v1464
    %v1789 = vunpack.c.l.b16 %v1465
    %v1790 = vunpack.c.l.b16 %v1466
    %v1791 = vunpack.c.l.b16 %v1467
    %v1792 = vunpack.c.l.b16 %v1468
    %v1793 = vunpack.c.l.b16 %v1469
    %v1794 = vunpack.c.l.b16 %v1470
    %v1795 = vunpack.c.l.b16 %v1471
    %v1796 = vunpack.c.l.b16 %v1472
    %v1797 = vunpack.c.l.b16 %v1473
    %v1798 = vunpack.c.l.b16 %v1474
    %v1799 = vunpack.c.l.b16 %v1475
    %v1800 = vunpack.c.l.b16 %v1476
    %v1801 = vunpack.c.l.b16 %v1477
    %v1802 = vunpack.c.l.b16 %v1478
    %v1803 = vunpack.c.l.b16 %v1479
    %v1804 = vunpack.c.l.b16 %v1480
    %v1805 = vunpack.c.l.b16 %v1481
    %v1806 = vunpack.c.l.b16 %v1482
    %v1807 = vunpack.c.l.b16 %v1483
    %v1808 = vunpack.c.l.b16 %v1484
    %v1809 = vunpack.c.l.b16 %v1485
    %v1810 = vunpack.c.l.b16 %v1486
    %v1811 = vunpack.c.l.b16 %v1487
    %v1812 = vunpack.c.l.b16 %v1488
    %v1813 = vunpack.c.l.b16 %v1489
    %v1814 = vunpack.c.l.b16 %v1490
    %v1815 = vunpack.c.l.b16 %v1491
    %v1816 = vunpack.c.l.b16 %v1492
    %v1817 = vunpack.c.l.b16 %v1493
    %v1818 = vunpack.c.l.b16 %v1494
    %v1819 = vunpack.c.l.b16 %v1495
    %v1820 = vunpack.c.l.b16 %v1496
    %v1821 = vunpack.c.l.b16 %v1497
    %v1822 = vunpack.c.l.b16 %v1498
    %v1823 = vunpack.c.l.b16 %v1499
    %v1824 = vunpack.c.l.b16 %v1500
    %v1825 = vunpack.c.l.b16 %v1501
    %v1826 = vunpack.c.l.b16 %v1502
    %v1827 = vunpack.c.l.b16 %v1503
    %v1828 = vunpack.c.l.b16 %v1504
    %v1829 = vpack.c.b16 %v1686, %v1685
    %v1830 = vpack.c.b16 %v1688, %v1687
    %v1831 = vpack.c.b16 %v1690, %v1689
    %v1832 = vpack.c.b16 %v1692, %v1691
    %v1833 = vpack.c.b16 %v1694, %v1693
    %v1834 = vpack.c.b16 %v1696, %v1695
    %v1835 = vpack.c.b16 %v1698, %v1697
    %v1836 = vpack.c.b16 %v1700, %v1699
    %v1837 = vpack.c.b16 %v1702, %v1701
    %v1838 = vpack.c.b16 %v1704, %v1703
    %v1839 = vpack.c.b16 %v1706, %v1705
    %v1840 = vpack.c.b16 %v1708, %v1707
    %v1841 = vpack.c.b16 %v1710, %v1709
    %v1842 = vpack.c.b16 %v1712, %v1711
    %v1843 = vpack.c.b16 %v1714, %v1713
    %v1844 = vpack.c.b16 %v1716, %v1715
    %v1845 = vpack.c.b16 %v1718, %v1717
    %v1846 = vpack.c.b16 %v1720, %v1719
    %v1847 = vpack.c.b16 %v1722, %v1721
    %v1848 = vpack.c.b16 %v1724, %v1723
    %v1849 = vpack.c.b16 %v1726, %v1725
    %v1850 = vpack.c.b16 %v1728, %v1727
    %v1851 = vpack.c.b16 %v1730, %v1729
    %v1852 = vpack.c.b16 %v1732, %v1731
    %v1853 = vpack.c.b16 %v1734, %v1733
    %v1854 = vpack.c.b16 %v1736, %v1735
    %v1855 = vpack.c.b16 %v1738, %v1737
    %v1856 = vpack.c.b16 %v1740, %v1739
    %v1857 = vpack.c.b16 %v1742, %v1741
    %v1858 = vpack.c.b16 %v1744, %v1743
    %v1859 = vpack.c.b16 %v1746, %v1745
    %v1860 = vpack.c.b16 %v1748, %v1747
    %v1861 = vpack.c.b16 %v1750, %v1749
    %v1862 = vpack.c.b16 %v1752, %v1751
    %v1863 = vpack.c.b16 %v1754, %v1753
    %v1864 = vpack.c.b16 %v1756, %v1755
    %v1865 = vpack.c.b16 %v1758, %v1757
    %v1866 = vpack.c.b16 %v1760, %v1759
    %v1867 = vpack.c.b16 %v1762, %v1761
    %v1868 = vpack.c.b16 %v1764, %v1763
    %v1869 = vpack.c.b16 %v1766, %v1765
    %v1870 = vpack.c.b16 %v1768, %v1767
    %v1871 = vpack.c.b16 %v1770, %v1769
    %v1872 = vpack.c.b16 %v1772, %v1771
    %v1873 = vpack.c.b16 %v1774, %v1773
    %v1874 = vpack.c.b16 %v1776, %v1775
    %v1875 = vpack.c.b16 %v1778, %v1777
    %v1876 = vpack.c.b16 %v1780, %v1779
    %v1877 = vpack.c.b16 %v1782, %v1781
    %v1878 = vpack.c.b16 %v1784, %v1783
    %v1879 = vpack.c.b16 %v1786, %v1785
    %v1880 = vpack.c.b16 %v1788, %v1787
    %v1881 = vpack.c.b16 %v1790, %v1789
    %v1882 = vpack.c.b16 %v1792, %v1791
    %v1883 = vpack.c.b16 %v1794, %v1793
    %v1884 = vpack.c.b16 %v1796, %v1795
    %v1885 = vpack.c.b16 %v1798, %v1797
    %v1886 = vpack.c.b16 %v1800, %v1799
    %v1887 = vpack.c.b16 %v1802, %v1801
    %v1888 = vpack.c.b16 %v1804, %v1803
    %v1889 = vpack.c.b16 %v1806, %v1805
    %v1890 = vpack.c.b16 %v1808, %v1807
    %v1891 = vpack.c.b16 %v1810, %v1809
    %v1892 = vpack.c.b16 %v1812, %v1811
    %v1893 = vpack.c.b16 %v1814, %v1813
    %v1894 = vpack.c.b16 %v1816, %v1815
    %v1895 = vpack.c.b16 %v1818, %v1817
    %v1896 = vpack.c.b16 %v1820, %v1819
    %v1897 = vpack.c.b16 %v1822, %v1821
    %v1898 = vpack.c.b16 %v1824, %v1823
    %v1899 = vpack.c.b16 %v1826, %v1825
    %v1900 = vpack.c.b16 %v1828, %v1827
    %1973 = vmatpush.bf16.msra.mxu0 %v1836
    %1974 = vmatpush.bf16.msra.mxu0 %v1835
    %1975 = vmatpush.bf16.msra.mxu0 %v1834
    %1976 = vmatpush.bf16.msra.mxu0 %v1833
    %1977 = vmatpush.bf16.msra.mxu0 %v1832
    %1978 = vmatpush.bf16.msra.mxu0 %v1831
    %1979 = vmatpush.bf16.msra.mxu0 %v1830
    %1980 = vmatpush.bf16.msra.mxu0 %v1829
    %1981 = vmatmul.bf16.gmra.mxu0 %v1523
    %v1982 = vpop.f32.mrf.mxu0
    %v1983 = vadd.f32 %v1507, %v1982
    %v1984 = vpop.f32.mrf.mxu0
    %1985 = vdwg.mxu0
    %1986 = vmatpush.bf16.msra.mxu0 %v1844
    %1987 = vmatpush.bf16.msra.mxu0 %v1843
    %1988 = vmatpush.bf16.msra.mxu0 %v1842
    %1989 = vmatpush.bf16.msra.mxu0 %v1841
    %1990 = vmatpush.bf16.msra.mxu0 %v1840
    %1991 = vmatpush.bf16.msra.mxu0 %v1839
    %1992 = vmatpush.bf16.msra.mxu0 %v1838
    %1993 = vmatpush.bf16.msra.mxu0 %v1837
    %1994 = vmatmul.bf16.gmra.mxu0 %v1524
    %v1995 = vpop.f32.mrf.mxu0
    %v1996 = vadd.f32 %v1983, %v1995
    %v1997 = vpop.f32.mrf.mxu0
    %1998 = vdwg.mxu0
    %1999 = vmatpush.bf16.msra.mxu0 %v1852
    %2000 = vmatpush.bf16.msra.mxu0 %v1851
    %2001 = vmatpush.bf16.msra.mxu0 %v1850
    %2002 = vmatpush.bf16.msra.mxu0 %v1849
    %2003 = vmatpush.bf16.msra.mxu0 %v1848
    %2004 = vmatpush.bf16.msra.mxu0 %v1847
    %2005 = vmatpush.bf16.msra.mxu0 %v1846
    %2006 = vmatpush.bf16.msra.mxu0 %v1845
    %2007 = vmatmul.bf16.gmra.mxu0 %v1525
    %v2008 = vpop.f32.mrf.mxu0
    %v2009 = vadd.f32 %v1996, %v2008
    %v2010 = vpop.f32.mrf.mxu0
    %2011 = vdwg.mxu0
    %2012 = vmatpush.bf16.msra.mxu0 %v1860
    %2013 = vmatpush.bf16.msra.mxu0 %v1859
    %2014 = vmatpush.bf16.msra.mxu0 %v1858
    %2015 = vmatpush.bf16.msra.mxu0 %v1857
    %2016 = vmatpush.bf16.msra.mxu0 %v1856
    %2017 = vmatpush.bf16.msra.mxu0 %v1855
    %2018 = vmatpush.bf16.msra.mxu0 %v1854
    %2019 = vmatpush.bf16.msra.mxu0 %v1853
    %2020 = vmatmul.bf16.gmra.mxu0 %v1526
    %v2021 = vpop.f32.mrf.mxu0
    %v2022 = vadd.f32 %v2009, %v2021
    %v2023 = vpop.f32.mrf.mxu0
    %2024 = vdwg.mxu0
    %2025 = vmatpush.bf16.msra.mxu0 %v1868
    %2026 = vmatpush.bf16.msra.mxu0 %v1867
    %2027 = vmatpush.bf16.msra.mxu0 %v1866
    %2028 = vmatpush.bf16.msra.mxu0 %v1865
    %2029 = vmatpush.bf16.msra.mxu0 %v1864
    %2030 = vmatpush.bf16.msra.mxu0 %v1863
    %2031 = vmatpush.bf16.msra.mxu0 %v1862
    %2032 = vmatpush.bf16.msra.mxu0 %v1861
    %2033 = vmatmul.bf16.gmra.mxu0 %v1527
    %v2034 = vpop.f32.mrf.mxu0
    %v2035 = vadd.f32 %v2022, %v2034
    %v2036 = vpop.f32.mrf.mxu0
    %2037 = vdwg.mxu0
    %2038 = vmatpush.bf16.msra.mxu0 %v1876
    %2039 = vmatpush.bf16.msra.mxu0 %v1875
    %2040 = vmatpush.bf16.msra.mxu0 %v1874
    %2041 = vmatpush.bf16.msra.mxu0 %v1873
    %2042 = vmatpush.bf16.msra.mxu0 %v1872
    %2043 = vmatpush.bf16.msra.mxu0 %v1871
    %2044 = vmatpush.bf16.msra.mxu0 %v1870
    %2045 = vmatpush.bf16.msra.mxu0 %v1869
    %2046 = vmatmul.bf16.gmra.mxu0 %v1528
    %v2047 = vpop.f32.mrf.mxu0
    %v2048 = vadd.f32 %v2035, %v2047
    %v2049 = vpop.f32.mrf.mxu0
    %2050 = vdwg.mxu0
    %2051 = vmatpush.bf16.msra.mxu0 %v1884
    %2052 = vmatpush.bf16.msra.mxu0 %v1883
    %2053 = vmatpush.bf16.msra.mxu0 %v1882
    %2054 = vmatpush.bf16.msra.mxu0 %v1881
    %2055 = vmatpush.bf16.msra.mxu0 %v1880
    %2056 = vmatpush.bf16.msra.mxu0 %v1879
    %2057 = vmatpush.bf16.msra.mxu0 %v1878
    %2058 = vmatpush.bf16.msra.mxu0 %v1877
    %2059 = vmatmul.bf16.gmra.mxu0 %v1529
    %v2060 = vpop.f32.mrf.mxu0
    %v2061 = vadd.f32 %v2048, %v2060
    %v2062 = vpop.f32.mrf.mxu0
    %2063 = vdwg.mxu0
    %2064 = vmatpush.bf16.msra.mxu0 %v1892
    %2065 = vmatpush.bf16.msra.mxu0 %v1891
    %2066 = vmatpush.bf16.msra.mxu0 %v1890
    %2067 = vmatpush.bf16.msra.mxu0 %v1889
    %2068 = vmatpush.bf16.msra.mxu0 %v1888
    %2069 = vmatpush.bf16.msra.mxu0 %v1887
    %2070 = vmatpush.bf16.msra.mxu0 %v1886
    %2071 = vmatpush.bf16.msra.mxu0 %v1885
    %2072 = vmatmul.bf16.gmra.mxu0 %v1530
    %v2073 = vpop.f32.mrf.mxu0
    %v2074 = vadd.f32 %v2061, %v2073
    %v2075 = vpop.f32.mrf.mxu0
    %2076 = vdwg.mxu0
    %2077 = vmatpush.bf16.msra.mxu0 %v1900
    %2078 = vmatpush.bf16.msra.mxu0 %v1899
    %2079 = vmatpush.bf16.msra.mxu0 %v1898
    %2080 = vmatpush.bf16.msra.mxu0 %v1897
    %2081 = vmatpush.bf16.msra.mxu0 %v1896
    %2082 = vmatpush.bf16.msra.mxu0 %v1895
    %2083 = vmatpush.bf16.msra.mxu0 %v1894
    %2084 = vmatpush.bf16.msra.mxu0 %v1893
    %2085 = vmatmul.bf16.gmra.mxu0 %v1531
    %v2086 = vpop.f32.mrf.mxu0
    %v2087 = vadd.f32 %v2074, %v2086
    %v2088 = vpop.f32.mrf.mxu0
    %2089 = vdwg.mxu0
    %2090 = vst [vmem:[#allocation14] sm:$0xff] %v2087
    // Predicated region
    $region58: #{tpu_custom_call.1} parent=1 // pred_check
      _
    $region59: #{tpu_custom_call.1} parent=1 // pred_check_branch
      %2092 = sbr.rel (0) target = $region61
    $region60: #{tpu_custom_call.1} parent=1 // pred_region
      %2094 = vsyncadd [#allocation5], 0
      %s2096 = sshll.u32 [#allocation14], 4
      %s2097 = int_to_ptr.vmem [resolvable:$true] %s2096
      %s2098 = sshll.u32 %s7, 4
      %s2099 = int_to_ptr.hbm [resolvable:$true] %s2098
      %2101 = dma.vmem_to_hbm [thread:$0]  %s2097, 128, %s2099, [#allocation5]
    $region61: #{tpu_custom_call.1} parent=1 // pred_fallthru
      _
    // Predicated region
    $region62: #{tpu_custom_call.1} parent=1 // pred_check
      _
    $region63: #{tpu_custom_call.1} parent=1 // pred_check_branch
      %2103 = sbr.rel (0) target = $region65
    $region64: #{tpu_custom_call.1} parent=1 // pred_region
      %2105 = dma.done [#allocation5], 128
    $region65: #{tpu_custom_call.1} parent=1 // pred_fallthru
      _
    %2106 = vsyncpa [#allocation4], 1
    %2107 = vsyncpa [#allocation7], 1
    %2108 = vsyncpa [#allocation10], 1
    %2109 = vsyncpa [#allocation13], 1
    %2110 = vsyncpa [#allocation5], 1

</llo_original>
